<compile_context>
chip_gen: v6e
topology: v6e:2x2x1
jax: 0.10.0
libtpu: 0.0.40
codegen_flags: <defaults>
</compile_context>

<pallas_src>
import math
import functools

import jax
import jax.numpy as jnp
from jax import lax
from jax.experimental import pallas as pl
from jax.experimental.pallas import tpu as pltpu


# ---------------------------------------------------------------------------
# In-kernel helpers (f32 elementwise math; bf16 only at MXU inputs)
# ---------------------------------------------------------------------------
def _layernorm(x, g, b, eps=1e-5):
    mu = jnp.mean(x, axis=-1, keepdims=True)
    var = jnp.mean((x - mu) ** 2, axis=-1, keepdims=True)
    return (x - mu) * lax.rsqrt(var + eps) * g + b


def _gelu_tanh(x):
    # GELU with tanh approximation (matches nn.GELU(approximate='tanh'))
    c = math.sqrt(2.0 / math.pi)
    return 0.5 * x * (1.0 + jnp.tanh(c * (x + 0.044715 * x * x * x)))


def _vmem_limit():
    # ~48 MiB on v7x (64 MiB physical), ~96 MiB on v5e/v6e (128 MiB physical)
    try:
        cap = pltpu.get_tpu_info().vmem_capacity_bytes
    except Exception:
        cap = 64 * 1024 * 1024
    return max(32 * 1024 * 1024, (cap * 3) // 4)


def _pick_seq_tile(S, target=256):
    t = max(1, min(S, target))
    while S % t:
        t -= 1
    return t


def _pick_batch_chunk(B, S, max_rows=2048):
    bb = max(1, min(B, max_rows // max(S, 1)))
    while B % bb:
        bb -= 1
    # keep >= 2 batch chunks when possible so the parallel grid axis can span 2 TCs (v7x)
    if B >= 2 and B // bb < 2:
        bb = max(1, bb // 2)
        while B % bb:
            bb -= 1
    return bb


def _pick_vocab_tile(V_pad):
    for t in (512, 384, 256, 128):
        if V_pad % t == 0:
            return t
    return 128


# ---------------------------------------------------------------------------
# Fused transformer-blocks kernel: grid = (batch_chunk, layer)
# ---------------------------------------------------------------------------
def gpt_blocks_kernel(x_ref, ln1g, ln1b, wqkv, bqkv, wo, bo,
                      ln2g, ln2b, wfc, bfc, wpr, bpr, lnfg, lnfb,
                      xn_ref, resid_ref,
                      *, num_heads, batch_chunk, seq_len, q_tile, kv_tile):
    l = pl.program_id(1)

    @pl.when(l == 0)
    def _():
        resid_ref[...] = x_ref[...]          # initialize residual stream for this chunk

    x = resid_ref[...]                       # (R, D) f32 with R = batch_chunk * seq_len
    _, D = x.shape
    H, S, Bb = num_heads, seq_len, batch_chunk
    hd = D // H
    scale = 1.0 / math.sqrt(hd)

    # --- attention branch ---------------------------------------------------
    h = _layernorm(x, ln1g[...], ln1b[...]).astype(jnp.bfloat16)
    qkv = jnp.dot(h, wqkv[...], preferred_element_type=jnp.float32) + bqkv[...]   # (R, 3D)

    # Head split: H lane slices over the whole folded batch, then cheap sublane
    # slices per batch element.  1/sqrt(hd) is folded into q here.
    q_parts, k_parts, v_parts = [], [], []
    for hh in range(H):
        cs = hh * hd
        qh = qkv[:, cs:cs + hd] * scale
        kh = qkv[:, D + cs:D + cs + hd]
        vh = qkv[:, 2 * D + cs:2 * D + cs + hd]
        for e in range(Bb):
            rs = e * S
            q_parts.append(qh[rs:rs + S])
            k_parts.append(kh[rs:rs + S])
            v_parts.append(vh[rs:rs + S])
    q3 = jnp.stack(q_parts, axis=0).astype(jnp.bfloat16)   # (H*Bb, S, hd)
    k3 = jnp.stack(k_parts, axis=0).astype(jnp.bfloat16)
    v3 = jnp.stack(v_parts, axis=0).astype(jnp.bfloat16)
    BH = H * Bb

    # Flash-style causal attention: static loops over q / kv tiles with online
    # softmax; future kv tiles skipped statically; mask only on diagonal tiles.
    out_tiles = []
    n_q = S // q_tile
    n_k = S // kv_tile
    for qi in range(n_q):
        q_lo = qi * q_tile
        q_hi = q_lo + q_tile - 1
        q_t = q3[:, q_lo:q_lo + q_tile, :]
        m = jnp.full((BH, q_tile, 1), -1e30, jnp.float32)
        lsum = jnp.zeros((BH, q_tile, 1), jnp.float32)
        acc = jnp.zeros((BH, q_tile, hd), jnp.float32)
        for kj in range(n_k):
            k_lo = kj * kv_tile
            if k_lo > q_hi:
                continue                       # fully masked (future) tile: skip
            k_t = k3[:, k_lo:k_lo + kv_tile, :]
            v_t = v3[:, k_lo:k_lo + kv_tile, :]
            s = jnp.einsum('bqd,bkd->bqk', q_t, k_t,
                           preferred_element_type=jnp.float32)   # (BH, tq, tk) f32
            if k_lo + kv_tile - 1 > q_lo:      # tile crosses the diagonal: apply mask
                rows = lax.broadcasted_iota(jnp.int32, (q_tile, kv_tile), 0) + q_lo
                cols = lax.broadcasted_iota(jnp.int32, (q_tile, kv_tile), 1) + k_lo
                s = jnp.where((rows >= cols)[None, :, :], s, -1e30)
            m_new = jnp.maximum(m, jnp.max(s, axis=-1, keepdims=True))
            alpha = jnp.exp(m - m_new)
            p = jnp.exp(s - m_new)
            lsum = alpha * lsum + jnp.sum(p, axis=-1, keepdims=True)
            acc = alpha * acc + jnp.einsum('bqk,bkd->bqd', p.astype(jnp.bfloat16), v_t,
                                           preferred_element_type=jnp.float32)
            m = m_new
        out_tiles.append(acc * pl.reciprocal(lsum, approx=True))
    attn3 = out_tiles[0] if n_q == 1 else jnp.concatenate(out_tiles, axis=1)  # (BH, S, hd)

    # merge heads back to (R, D) in bf16 (halves relayout traffic into the wo matmul)
    attn3 = attn3.astype(jnp.bfloat16)
    row_blocks = []
    for e in range(Bb):
        row_blocks.append(jnp.concatenate([attn3[hh * Bb + e] for hh in range(H)], axis=-1))
    attn = row_blocks[0] if Bb == 1 else jnp.concatenate(row_blocks, axis=0)   # (R, D)

    attn = jnp.dot(attn, wo[...], preferred_element_type=jnp.float32) + bo[...]
    x = x + attn

    # --- MLP branch -----------------------------------------------------------
    h2 = _layernorm(x, ln2g[...], ln2b[...]).astype(jnp.bfloat16)
    hm = jnp.dot(h2, wfc[...], preferred_element_type=jnp.float32) + bfc[...]
    hm = _gelu_tanh(hm)
    mlp = jnp.dot(hm.astype(jnp.bfloat16), wpr[...],
                  preferred_element_type=jnp.float32) + bpr[...]
    x = x + mlp

    resid_ref[...] = x

    # fused final LayerNorm on the last layer: write the normalized activations
    @pl.when(l == pl.num_programs(1) - 1)
    def _():
        xn_ref[...] = _layernorm(x, lnfg[...], lnfb[...]).astype(xn_ref.dtype)


_LAYER_PARAM_NAMES = ['ln1_g', 'ln1_b', 'w_qkv', 'b_qkv', 'w_out', 'b_out',
                      'ln2_g', 'ln2_b', 'w_fc', 'b_fc', 'w_proj', 'b_proj']


def gpt_blocks(x_flat, stacked, lnf_g, lnf_b, *, num_heads, batch, seq_len):
    """All transformer layers (plus the final LayerNorm) in one pallas_call.
    x_flat is (B*S, D); returns the final-LayerNormed activations (B*S, D) f32."""
    R_total, D = x_flat.shape
    L = stacked['w_qkv'].shape[0]
    Bb = _pick_batch_chunk(batch, seq_len)
    rows = Bb * seq_len
    num_chunks = batch // Bb

    args = [stacked[n] for n in _LAYER_PARAM_NAMES]

    def layer_spec(a):
        # select the current layer's slice; kernel sees the trailing 2-D shape
        return pl.BlockSpec((None,) + a.shape[1:], lambda b, l: (l, 0, 0))

    in_specs = [pl.BlockSpec((rows, D), lambda b, l: (b, 0))]
    in_specs += [layer_spec(a) for a in args]
    in_specs += [pl.BlockSpec((1, D), lambda b, l: (0, 0)),     # lnf_g
                 pl.BlockSpec((1, D), lambda b, l: (0, 0))]     # lnf_b

    kern = functools.partial(
        gpt_blocks_kernel, num_heads=num_heads, batch_chunk=Bb, seq_len=seq_len,
        q_tile=_pick_seq_tile(seq_len, 256), kv_tile=_pick_seq_tile(seq_len, 256))

    # NOTE: deeper weight buffering (pl.Buffered(3)) on the big weight specs is a
    # further v5e/v6e-only tuning knob; left at the default double-buffering here.
    return pl.pallas_call(
        kern,
        out_shape=jax.ShapeDtypeStruct((R_total, D), jnp.float32),
        grid=(num_chunks, L),
        in_specs=in_specs,
        out_specs=pl.BlockSpec((rows, D), lambda b, l: (b, 0)),
        scratch_shapes=[pltpu.VMEM((rows, D), jnp.float32)],    # resident residual stream
        compiler_params=pltpu.CompilerParams(
            dimension_semantics=("parallel", "arbitrary"),
            vmem_limit_bytes=_vmem_limit()),
    )(x_flat, *args, lnf_g, lnf_b)


# ---------------------------------------------------------------------------
# lm_head: vocab-tiled matmul; weights streamed exactly once
# ---------------------------------------------------------------------------
def lm_head_kernel(x_ref, w_ref, o_ref, xb_ref):
    @pl.when(pl.program_id(0) == 0)
    def _():
        xb_ref[...] = x_ref[...].astype(jnp.bfloat16)   # cast activations once, reuse per tile
    o_ref[...] = jnp.dot(xb_ref[...], w_ref[...], preferred_element_type=jnp.float32)


def lm_head(xn, w_lm, vocab_size):
    R, D = xn.shape
    V_pad = w_lm.shape[1]                    # already padded to a multiple of 128
    tv = _pick_vocab_tile(V_pad)
    logits = pl.pallas_call(
        lm_head_kernel,
        out_shape=jax.ShapeDtypeStruct((R, V_pad), jnp.float32),
        grid=(V_pad // tv,),
        in_specs=[pl.BlockSpec((R, D), lambda j: (0, 0)),
                  pl.BlockSpec((D, tv), lambda j: (0, j))],
        out_specs=pl.BlockSpec((R, tv), lambda j: (0, j)),
        scratch_shapes=[pltpu.VMEM((R, D), jnp.bfloat16)],
        compiler_params=pltpu.CompilerParams(
            dimension_semantics=("arbitrary",),
            vmem_limit_bytes=_vmem_limit()),
    )(xn, w_lm)
    return logits[:, :vocab_size]


# ---------------------------------------------------------------------------
# Model: deterministic parameter init + forward
# ---------------------------------------------------------------------------
class Config:
    vocab_size = 128
    block_size = 16
    num_layers = 2
    num_heads = 4
    embed_dim = 32


def init_params(key, cfg):
    std = 0.02
    scaled_std = std * (2 * cfg.num_layers) ** (-0.5)      # NANOGPT_SCALE_INIT
    L, D, V = cfg.num_layers, cfg.embed_dim, cfg.vocab_size
    keys = iter(jax.random.split(key, 16))

    def normal(shape, s, dtype=jnp.float32):
        return (jax.random.normal(next(keys), shape, jnp.float32) * s).astype(dtype)

    wte = normal((V, D), std)                               # f32 for the embedding gather
    V_pad = ((V + 127) // 128) * 128
    # tied lm_head weight: pre-transposed once at init, padded to a 128-multiple vocab, bf16
    w_lm = jnp.zeros((D, V_pad), jnp.bfloat16).at[:, :V].set(wte.T.astype(jnp.bfloat16))

    params = {
        'wte': wte,
        'w_lm': w_lm,
        'wpe': normal((cfg.block_size, D), std),
        'lnf_g': jnp.ones((1, D), jnp.float32),
        'lnf_b': jnp.zeros((1, D), jnp.float32),
        # per-layer params stacked along a leading layer axis; Linear weights stored as
        # (in, out) = W.T of the PyTorch (out, in) weight, in bf16 for the MXU.
        'stacked': {
            'ln1_g': jnp.ones((L, 1, D), jnp.float32),
            'ln1_b': jnp.zeros((L, 1, D), jnp.float32),
            'w_qkv': normal((L, D, 3 * D), std, jnp.bfloat16),
            'b_qkv': jnp.zeros((L, 1, 3 * D), jnp.float32),
            'w_out': normal((L, D, D), scaled_std, jnp.bfloat16),
            'b_out': jnp.zeros((L, 1, D), jnp.float32),
            'ln2_g': jnp.ones((L, 1, D), jnp.float32),
            'ln2_b': jnp.zeros((L, 1, D), jnp.float32),
            'w_fc': normal((L, D, 4 * D), std, jnp.bfloat16),
            'b_fc': jnp.zeros((L, 1, 4 * D), jnp.float32),
            'w_proj': normal((L, 4 * D, D), scaled_std, jnp.bfloat16),
            'b_proj': jnp.zeros((L, 1, D), jnp.float32),
        },
    }
    return params


def gpt_forward(params, input_ids, cfg):
    B, S = input_ids.shape
    assert S <= cfg.block_size
    D = cfg.embed_dim
    # Embedding gathers are glue (plain JAX outside the kernels).
    tok = jnp.take(params['wte'], input_ids, axis=0)        # (B, S, D)
    pos = params['wpe'][:S][None, :, :]                     # (1, S, D)
    x = (tok + pos).reshape(B * S, D)                       # rows = batch * seq

    xn = gpt_blocks(x, params['stacked'], params['lnf_g'], params['lnf_b'],
                    num_heads=cfg.num_heads, batch=B, seq_len=S)
    logits = lm_head(xn, params['w_lm'], cfg.vocab_size).reshape(B, S, cfg.vocab_size)

    # TODO(synk): cross-entropy loss path (targets != None) not implemented; matches the
    # PyTorch forward with targets=None, which returns (logits, None).
    return logits, None


# ---------------------------------------------------------------------------
if __name__ == "__main__":
    cfg = Config()
    key = jax.random.PRNGKey(0)
    pkey, dkey = jax.random.split(key)
    params = init_params(pkey, cfg)

    B, S = 2, 8
    input_ids = jax.random.randint(dkey, (B, S), 0, cfg.vocab_size, dtype=jnp.int32)

    logits, loss = gpt_forward(params, input_ids, cfg)
    logits = jax.block_until_ready(logits)
    assert logits.shape == (B, S, cfg.vocab_size)
    assert bool(jnp.all(jnp.isfinite(logits)))
    print("KERNEL_OK")
</pallas_src>

<mosaic_0001>
module attributes {stable_mosaic.version = 11 : i64} {
  func.func @gpt_blocks_kernel(%arg0: i32, %arg1: i32, %arg2: memref<8x32xf32, #tpu.memory_space<vmem>>, %arg3: memref<1x1x32xf32, #tpu.memory_space<vmem>>, %arg4: memref<1x1x32xf32, #tpu.memory_space<vmem>>, %arg5: memref<1x32x96xbf16, #tpu.memory_space<vmem>>, %arg6: memref<1x1x96xf32, #tpu.memory_space<vmem>>, %arg7: memref<1x32x32xbf16, #tpu.memory_space<vmem>>, %arg8: memref<1x1x32xf32, #tpu.memory_space<vmem>>, %arg9: memref<1x1x32xf32, #tpu.memory_space<vmem>>, %arg10: memref<1x1x32xf32, #tpu.memory_space<vmem>>, %arg11: memref<1x32x128xbf16, #tpu.memory_space<vmem>>, %arg12: memref<1x1x128xf32, #tpu.memory_space<vmem>>, %arg13: memref<1x128x32xbf16, #tpu.memory_space<vmem>>, %arg14: memref<1x1x32xf32, #tpu.memory_space<vmem>>, %arg15: memref<1x32xf32, #tpu.memory_space<vmem>>, %arg16: memref<1x32xf32, #tpu.memory_space<vmem>>, %arg17: memref<8x32xf32, #tpu.memory_space<vmem>>, %arg18: memref<8x32xf32, #tpu.memory_space<vmem>>) attributes {dimension_semantics = [#tpu.dimension_semantics<parallel>, #tpu.dimension_semantics<arbitrary>], iteration_bounds = array<i64: 2, 2>, scalar_prefetch = 0 : i64, scratch_operands = 1 : i64, tpu.core_type = #tpu.core_type<tc>, window_params = [{transform_indices = @transform_0, window_bounds = array<i64: 8, 32>}, {transform_indices = @transform_1, window_bounds = array<i64: 1, 1, 32>}, {transform_indices = @transform_2, window_bounds = array<i64: 1, 1, 32>}, {transform_indices = @transform_3, window_bounds = array<i64: 1, 32, 96>}, {transform_indices = @transform_4, window_bounds = array<i64: 1, 1, 96>}, {transform_indices = @transform_5, window_bounds = array<i64: 1, 32, 32>}, {transform_indices = @transform_6, window_bounds = array<i64: 1, 1, 32>}, {transform_indices = @transform_7, window_bounds = array<i64: 1, 1, 32>}, {transform_indices = @transform_8, window_bounds = array<i64: 1, 1, 32>}, {transform_indices = @transform_9, window_bounds = array<i64: 1, 32, 128>}, {transform_indices = @transform_10, window_bounds = array<i64: 1, 1, 128>}, {transform_indices = @transform_11, window_bounds = array<i64: 1, 128, 32>}, {transform_indices = @transform_12, window_bounds = array<i64: 1, 1, 32>}, {pipeline_mode = #tpu.pipeline_mode<synchronous>, transform_indices = @transform_13, window_bounds = array<i64: 1, 32>}, {pipeline_mode = #tpu.pipeline_mode<synchronous>, transform_indices = @transform_14, window_bounds = array<i64: 1, 32>}, {transform_indices = @transform_15, window_bounds = array<i64: 8, 32>}]} {
    %c0_i32 = arith.constant 0 : i32
    %0 = arith.cmpi eq, %arg1, %c0_i32 : i32
    %1 = arith.extui %0 : i1 to i32
    %c0_i32_0 = arith.constant 0 : i32
    %2 = arith.cmpi ne, %1, %c0_i32_0 : i32
    scf.if %2 {
      %c0_72 = arith.constant 0 : index
      %c0_73 = arith.constant 0 : index
      %190 = vector.load %arg2[%c0_72, %c0_73] : memref<8x32xf32, #tpu.memory_space<vmem>>, vector<8x32xf32>
      %c0_74 = arith.constant 0 : index
      %c0_75 = arith.constant 0 : index
      %191 = vector.load %arg18[%c0_74, %c0_75] : memref<8x32xf32, #tpu.memory_space<vmem>>, vector<8x32xf32>
      tpu.vector_store %arg18[%c0_74, %c0_75], %190 {strides = array<i32>} : memref<8x32xf32, #tpu.memory_space<vmem>>, vector<8x32xf32>,
    } else {
    }
    %c0 = arith.constant 0 : index
    %c0_1 = arith.constant 0 : index
    %3 = vector.load %arg18[%c0, %c0_1] : memref<8x32xf32, #tpu.memory_space<vmem>>, vector<8x32xf32>
    %c0_2 = arith.constant 0 : index
    %c0_3 = arith.constant 0 : index
    %c0_4 = arith.constant 0 : index
    %4 = vector.load %arg3[%c0_2, %c0_3, %c0_4] : memref<1x1x32xf32, #tpu.memory_space<vmem>>, vector<1x1x32xf32>
    %5 = vector.shape_cast %4 : vector<1x1x32xf32> to vector<1x32xf32>
    %c0_5 = arith.constant 0 : index
    %c0_6 = arith.constant 0 : index
    %c0_7 = arith.constant 0 : index
    %6 = vector.load %arg4[%c0_5, %c0_6, %c0_7] : memref<1x1x32xf32, #tpu.memory_space<vmem>>, vector<1x1x32xf32>
    %7 = vector.shape_cast %6 : vector<1x1x32xf32> to vector<1x32xf32>
    %cst = arith.constant dense<0.000000e+00> : vector<8xf32>
    %8 = vector.multi_reduction <add>, %3, %cst [1] : vector<8x32xf32> to vector<8xf32>
    %9 = vector.shape_cast %8 : vector<8xf32> to vector<8x1xf32>
    %cst_8 = arith.constant 3.200000e+01 : f32
    %10 = vector.broadcast %cst_8 : f32 to vector<8x1xf32>
    %11 = arith.divf %9, %10 : vector<8x1xf32>
    %12 = vector.broadcast %11 : vector<8x1xf32> to vector<8x32xf32>
    %13 = arith.subf %3, %12 : vector<8x32xf32>
    %14 = arith.mulf %13, %13 : vector<8x32xf32>
    %cst_9 = arith.constant dense<0.000000e+00> : vector<8xf32>
    %15 = vector.multi_reduction <add>, %14, %cst_9 [1] : vector<8x32xf32> to vector<8xf32>
    %16 = vector.shape_cast %15 : vector<8xf32> to vector<8x1xf32>
    %cst_10 = arith.constant 3.200000e+01 : f32
    %17 = vector.broadcast %cst_10 : f32 to vector<8x1xf32>
    %18 = arith.divf %16, %17 : vector<8x1xf32>
    %19 = vector.broadcast %11 : vector<8x1xf32> to vector<8x32xf32>
    %20 = arith.subf %3, %19 : vector<8x32xf32>
    %cst_11 = arith.constant 9.99999974E-6 : f32
    %21 = vector.broadcast %cst_11 : f32 to vector<8x1xf32>
    %22 = arith.addf %18, %21 : vector<8x1xf32>
    %23 = math.rsqrt %22 : vector<8x1xf32>
    %24 = vector.broadcast %23 : vector<8x1xf32> to vector<8x32xf32>
    %25 = arith.mulf %20, %24 : vector<8x32xf32>
    %26 = vector.broadcast %5 : vector<1x32xf32> to vector<8x32xf32>
    %27 = arith.mulf %25, %26 : vector<8x32xf32>
    %28 = vector.broadcast %7 : vector<1x32xf32> to vector<8x32xf32>
    %29 = arith.addf %27, %28 : vector<8x32xf32>
    %30 = arith.truncf %29 : vector<8x32xf32> to vector<8x32xbf16>
    %c0_12 = arith.constant 0 : index
    %c0_13 = arith.constant 0 : index
    %c0_14 = arith.constant 0 : index
    %31 = vector.load %arg5[%c0_12, %c0_13, %c0_14] : memref<1x32x96xbf16, #tpu.memory_space<vmem>>, vector<1x32x96xbf16>
    %32 = vector.shape_cast %31 : vector<1x32x96xbf16> to vector<32x96xbf16>
    %cst_15 = arith.constant dense<0.000000e+00> : vector<8x96xf32>
    %33 = tpu.matmul %30, %32, %cst_15 {dimension_numbers = #tpu.dot_dimension_numbers<[1], [0], [0], [1], [0, 0, 1, 1], [], []>} : vector<8x32xbf16>, vector<32x96xbf16>, vector<8x96xf32> -> vector<8x96xf32>
    %c0_16 = arith.constant 0 : index
    %c0_17 = arith.constant 0 : index
    %c0_18 = arith.constant 0 : index
    %34 = vector.load %arg6[%c0_16, %c0_17, %c0_18] : memref<1x1x96xf32, #tpu.memory_space<vmem>>, vector<1x1x96xf32>
    %35 = vector.shape_cast %34 : vector<1x1x96xf32> to vector<1x96xf32>
    %36 = vector.broadcast %35 : vector<1x96xf32> to vector<8x96xf32>
    %37 = arith.addf %33, %36 : vector<8x96xf32>
    %38 = vector.extract_strided_slice %37 {offsets = [0, 0], sizes = [8, 8], strides = [1, 1]} : vector<8x96xf32> to vector<8x8xf32>
    %cst_19 = arith.constant 0.353553385 : f32
    %39 = vector.broadcast %cst_19 : f32 to vector<8x8xf32>
    %40 = arith.mulf %38, %39 : vector<8x8xf32>
    %41 = vector.extract_strided_slice %37 {offsets = [0, 32], sizes = [8, 8], strides = [1, 1]} : vector<8x96xf32> to vector<8x8xf32>
    %42 = vector.extract_strided_slice %37 {offsets = [0, 64], sizes = [8, 8], strides = [1, 1]} : vector<8x96xf32> to vector<8x8xf32>
    %43 = vector.extract_strided_slice %37 {offsets = [0, 8], sizes = [8, 8], strides = [1, 1]} : vector<8x96xf32> to vector<8x8xf32>
    %cst_20 = arith.constant 0.353553385 : f32
    %44 = vector.broadcast %cst_20 : f32 to vector<8x8xf32>
    %45 = arith.mulf %43, %44 : vector<8x8xf32>
    %46 = vector.extract_strided_slice %37 {offsets = [0, 40], sizes = [8, 8], strides = [1, 1]} : vector<8x96xf32> to vector<8x8xf32>
    %47 = vector.extract_strided_slice %37 {offsets = [0, 72], sizes = [8, 8], strides = [1, 1]} : vector<8x96xf32> to vector<8x8xf32>
    %48 = vector.extract_strided_slice %37 {offsets = [0, 16], sizes = [8, 8], strides = [1, 1]} : vector<8x96xf32> to vector<8x8xf32>
    %cst_21 = arith.constant 0.353553385 : f32
    %49 = vector.broadcast %cst_21 : f32 to vector<8x8xf32>
    %50 = arith.mulf %48, %49 : vector<8x8xf32>
    %51 = vector.extract_strided_slice %37 {offsets = [0, 48], sizes = [8, 8], strides = [1, 1]} : vector<8x96xf32> to vector<8x8xf32>
    %52 = vector.extract_strided_slice %37 {offsets = [0, 80], sizes = [8, 8], strides = [1, 1]} : vector<8x96xf32> to vector<8x8xf32>
    %53 = vector.extract_strided_slice %37 {offsets = [0, 24], sizes = [8, 8], strides = [1, 1]} : vector<8x96xf32> to vector<8x8xf32>
    %cst_22 = arith.constant 0.353553385 : f32
    %54 = vector.broadcast %cst_22 : f32 to vector<8x8xf32>
    %55 = arith.mulf %53, %54 : vector<8x8xf32>
    %56 = vector.extract_strided_slice %37 {offsets = [0, 56], sizes = [8, 8], strides = [1, 1]} : vector<8x96xf32> to vector<8x8xf32>
    %57 = vector.extract_strided_slice %37 {offsets = [0, 88], sizes = [8, 8], strides = [1, 1]} : vector<8x96xf32> to vector<8x8xf32>
    %58 = vector.shape_cast %40 : vector<8x8xf32> to vector<1x8x8xf32>
    %59 = vector.shape_cast %45 : vector<8x8xf32> to vector<1x8x8xf32>
    %60 = vector.shape_cast %50 : vector<8x8xf32> to vector<1x8x8xf32>
    %61 = vector.shape_cast %55 : vector<8x8xf32> to vector<1x8x8xf32>
    %62 = tpu.concatenate %58, %59, %60, %61 in 0 : vector<1x8x8xf32>, vector<1x8x8xf32>, vector<1x8x8xf32>, vector<1x8x8xf32> -> vector<4x8x8xf32>
    %63 = arith.truncf %62 : vector<4x8x8xf32> to vector<4x8x8xbf16>
    %64 = vector.shape_cast %41 : vector<8x8xf32> to vector<1x8x8xf32>
    %65 = vector.shape_cast %46 : vector<8x8xf32> to vector<1x8x8xf32>
    %66 = vector.shape_cast %51 : vector<8x8xf32> to vector<1x8x8xf32>
    %67 = vector.shape_cast %56 : vector<8x8xf32> to vector<1x8x8xf32>
    %68 = tpu.concatenate %64, %65, %66, %67 in 0 : vector<1x8x8xf32>, vector<1x8x8xf32>, vector<1x8x8xf32>, vector<1x8x8xf32> -> vector<4x8x8xf32>
    %69 = arith.truncf %68 : vector<4x8x8xf32> to vector<4x8x8xbf16>
    %70 = vector.shape_cast %42 : vector<8x8xf32> to vector<1x8x8xf32>
    %71 = vector.shape_cast %47 : vector<8x8xf32> to vector<1x8x8xf32>
    %72 = vector.shape_cast %52 : vector<8x8xf32> to vector<1x8x8xf32>
    %73 = vector.shape_cast %57 : vector<8x8xf32> to vector<1x8x8xf32>
    %74 = tpu.concatenate %70, %71, %72, %73 in 0 : vector<1x8x8xf32>, vector<1x8x8xf32>, vector<1x8x8xf32>, vector<1x8x8xf32> -> vector<4x8x8xf32>
    %75 = arith.truncf %74 : vector<4x8x8xf32> to vector<4x8x8xbf16>
    %cst_23 = arith.constant -1.000000e+30 : f32
    %76 = vector.broadcast %cst_23 : f32 to vector<4x8x1xf32>
    %cst_24 = arith.constant 0.000000e+00 : f32
    %77 = vector.broadcast %cst_24 : f32 to vector<4x8x1xf32>
    %cst_25 = arith.constant 0.000000e+00 : f32
    %78 = vector.broadcast %cst_25 : f32 to vector<4x8x8xf32>
    "tpu.trace_start"() <{level = 10 : i32, message = "bqd,bkd->bqk"}> : () -> ()
    %cst_26 = arith.constant dense<0.000000e+00> : vector<4x8x8xf32>
    %79 = tpu.matmul %63, %69, %cst_26 {dimension_numbers = #tpu.dot_dimension_numbers<[2], [2], [1], [1], [0, 0, 0, 1, 1, 1], [0], [0]>} : vector<4x8x8xbf16>, vector<4x8x8xbf16>, vector<4x8x8xf32> -> vector<4x8x8xf32>
    "tpu.trace_stop"() : () -> ()
    %80 = tpu.iota {dimensions = array<i32: 0>} : vector<8x8xi32>
    %c0_i32_27 = arith.constant 0 : i32
    %81 = vector.broadcast %c0_i32_27 : i32 to vector<8x8xi32>
    %82 = arith.addi %80, %81 : vector<8x8xi32>
    %83 = tpu.iota {dimensions = array<i32: 1>} : vector<8x8xi32>
    %c0_i32_28 = arith.constant 0 : i32
    %84 = vector.broadcast %c0_i32_28 : i32 to vector<8x8xi32>
    %85 = arith.addi %83, %84 : vector<8x8xi32>
    %86 = arith.cmpi sge, %82, %85 : vector<8x8xi32>
    %87 = vector.shape_cast %86 : vector<8x8xi1> to vector<1x8x8xi1>
    %cst_29 = arith.constant -1.000000e+30 : f32
    %88 = vector.shape_cast %87 : vector<1x8x8xi1> to vector<1x8x8xi1>
    %89 = vector.broadcast %88 : vector<1x8x8xi1> to vector<4x8x8xi1>
    %90 = vector.broadcast %cst_29 : f32 to vector<4x8x8xf32>
    %91 = arith.select %89, %79, %90 : vector<4x8x8xi1>, vector<4x8x8xf32>
    %cst_30 = arith.constant dense<0xFF800000> : vector<4x8xf32>
    %92 = vector.multi_reduction <maximumf>, %91, %cst_30 [2] : vector<4x8x8xf32> to vector<4x8xf32>
    %93 = vector.shape_cast %92 : vector<4x8xf32> to vector<4x8x1xf32>
    %94 = arith.maximumf %76, %93 : vector<4x8x1xf32>
    %95 = arith.subf %76, %94 : vector<4x8x1xf32>
    %96 = math.exp %95 : vector<4x8x1xf32>
    %97 = vector.broadcast %94 : vector<4x8x1xf32> to vector<4x8x8xf32>
    %98 = arith.subf %91, %97 : vector<4x8x8xf32>
    %99 = math.exp %98 : vector<4x8x8xf32>
    %100 = arith.mulf %96, %77 : vector<4x8x1xf32>
    %cst_31 = arith.constant dense<0.000000e+00> : vector<4x8xf32>
    %101 = vector.multi_reduction <add>, %99, %cst_31 [2] : vector<4x8x8xf32> to vector<4x8xf32>
    %102 = vector.shape_cast %101 : vector<4x8xf32> to vector<4x8x1xf32>
    %103 = arith.addf %100, %102 : vector<4x8x1xf32>
    %104 = vector.broadcast %96 : vector<4x8x1xf32> to vector<4x8x8xf32>
    %105 = arith.mulf %104, %78 : vector<4x8x8xf32>
    %106 = arith.truncf %99 : vector<4x8x8xf32> to vector<4x8x8xbf16>
    "tpu.trace_start"() <{level = 10 : i32, message = "bqk,bkd->bqd"}> : () -> ()
    %cst_32 = arith.constant dense<0.000000e+00> : vector<4x8x8xf32>
    %107 = tpu.matmul %106, %75, %cst_32 {dimension_numbers = #tpu.dot_dimension_numbers<[2], [1], [1], [2], [0, 0, 0, 1, 1, 2], [0], [0]>} : vector<4x8x8xbf16>, vector<4x8x8xbf16>, vector<4x8x8xf32> -> vector<4x8x8xf32>
    "tpu.trace_stop"() : () -> ()
    %108 = arith.addf %105, %107 : vector<4x8x8xf32>
    %109 = tpu.reciprocal %103 {approx = true} : vector<4x8x1xf32> -> vector<4x8x1xf32>
    %110 = vector.broadcast %109 : vector<4x8x1xf32> to vector<4x8x8xf32>
    %111 = arith.mulf %108, %110 : vector<4x8x8xf32>
    %112 = arith.truncf %111 : vector<4x8x8xf32> to vector<4x8x8xbf16>
    %113 = vector.extract_strided_slice %112 {offsets = [0, 0, 0], sizes = [1, 8, 8], strides = [1, 1, 1]} : vector<4x8x8xbf16> to vector<1x8x8xbf16>
    %114 = vector.shape_cast %113 : vector<1x8x8xbf16> to vector<8x8xbf16>
    %115 = vector.extract_strided_slice %112 {offsets = [1, 0, 0], sizes = [1, 8, 8], strides = [1, 1, 1]} : vector<4x8x8xbf16> to vector<1x8x8xbf16>
    %116 = vector.shape_cast %115 : vector<1x8x8xbf16> to vector<8x8xbf16>
    %117 = vector.extract_strided_slice %112 {offsets = [2, 0, 0], sizes = [1, 8, 8], strides = [1, 1, 1]} : vector<4x8x8xbf16> to vector<1x8x8xbf16>
    %118 = vector.shape_cast %117 : vector<1x8x8xbf16> to vector<8x8xbf16>
    %119 = vector.extract_strided_slice %112 {offsets = [3, 0, 0], sizes = [1, 8, 8], strides = [1, 1, 1]} : vector<4x8x8xbf16> to vector<1x8x8xbf16>
    %120 = vector.shape_cast %119 : vector<1x8x8xbf16> to vector<8x8xbf16>
    %121 = tpu.concatenate %114, %116, %118, %120 in 1 : vector<8x8xbf16>, vector<8x8xbf16>, vector<8x8xbf16>, vector<8x8xbf16> -> vector<8x32xbf16>
    %c0_33 = arith.constant 0 : index
    %c0_34 = arith.constant 0 : index
    %c0_35 = arith.constant 0 : index
    %122 = vector.load %arg7[%c0_33, %c0_34, %c0_35] : memref<1x32x32xbf16, #tpu.memory_space<vmem>>, vector<1x32x32xbf16>
    %123 = vector.shape_cast %122 : vector<1x32x32xbf16> to vector<32x32xbf16>
    %cst_36 = arith.constant dense<0.000000e+00> : vector<8x32xf32>
    %124 = tpu.matmul %121, %123, %cst_36 {dimension_numbers = #tpu.dot_dimension_numbers<[1], [0], [0], [1], [0, 0, 1, 1], [], []>} : vector<8x32xbf16>, vector<32x32xbf16>, vector<8x32xf32> -> vector<8x32xf32>
    %c0_37 = arith.constant 0 : index
    %c0_38 = arith.constant 0 : index
    %c0_39 = arith.constant 0 : index
    %125 = vector.load %arg8[%c0_37, %c0_38, %c0_39] : memref<1x1x32xf32, #tpu.memory_space<vmem>>, vector<1x1x32xf32>
    %126 = vector.shape_cast %125 : vector<1x1x32xf32> to vector<1x32xf32>
    %127 = vector.broadcast %126 : vector<1x32xf32> to vector<8x32xf32>
    %128 = arith.addf %124, %127 : vector<8x32xf32>
    %129 = arith.addf %3, %128 : vector<8x32xf32>
    %c0_40 = arith.constant 0 : index
    %c0_41 = arith.constant 0 : index
    %c0_42 = arith.constant 0 : index
    %130 = vector.load %arg9[%c0_40, %c0_41, %c0_42] : memref<1x1x32xf32, #tpu.memory_space<vmem>>, vector<1x1x32xf32>
    %131 = vector.shape_cast %130 : vector<1x1x32xf32> to vector<1x32xf32>
    %c0_43 = arith.constant 0 : index
    %c0_44 = arith.constant 0 : index
    %c0_45 = arith.constant 0 : index
    %132 = vector.load %arg10[%c0_43, %c0_44, %c0_45] : memref<1x1x32xf32, #tpu.memory_space<vmem>>, vector<1x1x32xf32>
    %133 = vector.shape_cast %132 : vector<1x1x32xf32> to vector<1x32xf32>
    %cst_46 = arith.constant dense<0.000000e+00> : vector<8xf32>
    %134 = vector.multi_reduction <add>, %129, %cst_46 [1] : vector<8x32xf32> to vector<8xf32>
    %135 = vector.shape_cast %134 : vector<8xf32> to vector<8x1xf32>
    %cst_47 = arith.constant 3.200000e+01 : f32
    %136 = vector.broadcast %cst_47 : f32 to vector<8x1xf32>
    %137 = arith.divf %135, %136 : vector<8x1xf32>
    %138 = vector.broadcast %137 : vector<8x1xf32> to vector<8x32xf32>
    %139 = arith.subf %129, %138 : vector<8x32xf32>
    %140 = arith.mulf %139, %139 : vector<8x32xf32>
    %cst_48 = arith.constant dense<0.000000e+00> : vector<8xf32>
    %141 = vector.multi_reduction <add>, %140, %cst_48 [1] : vector<8x32xf32> to vector<8xf32>
    %142 = vector.shape_cast %141 : vector<8xf32> to vector<8x1xf32>
    %cst_49 = arith.constant 3.200000e+01 : f32
    %143 = vector.broadcast %cst_49 : f32 to vector<8x1xf32>
    %144 = arith.divf %142, %143 : vector<8x1xf32>
    %145 = vector.broadcast %137 : vector<8x1xf32> to vector<8x32xf32>
    %146 = arith.subf %129, %145 : vector<8x32xf32>
    %cst_50 = arith.constant 9.99999974E-6 : f32
    %147 = vector.broadcast %cst_50 : f32 to vector<8x1xf32>
    %148 = arith.addf %144, %147 : vector<8x1xf32>
    %149 = math.rsqrt %148 : vector<8x1xf32>
    %150 = vector.broadcast %149 : vector<8x1xf32> to vector<8x32xf32>
    %151 = arith.mulf %146, %150 : vector<8x32xf32>
    %152 = vector.broadcast %131 : vector<1x32xf32> to vector<8x32xf32>
    %153 = arith.mulf %151, %152 : vector<8x32xf32>
    %154 = vector.broadcast %133 : vector<1x32xf32> to vector<8x32xf32>
    %155 = arith.addf %153, %154 : vector<8x32xf32>
    %156 = arith.truncf %155 : vector<8x32xf32> to vector<8x32xbf16>
    %c0_51 = arith.constant 0 : index
    %c0_52 = arith.constant 0 : index
    %c0_53 = arith.constant 0 : index
    %157 = vector.load %arg11[%c0_51, %c0_52, %c0_53] : memref<1x32x128xbf16, #tpu.memory_space<vmem>>, vector<1x32x128xbf16>
    %158 = vector.shape_cast %157 : vector<1x32x128xbf16> to vector<32x128xbf16>
    %cst_54 = arith.constant dense<0.000000e+00> : vector<8x128xf32>
    %159 = tpu.matmul %156, %158, %cst_54 {dimension_numbers = #tpu.dot_dimension_numbers<[1], [0], [0], [1], [0, 0, 1, 1], [], []>} : vector<8x32xbf16>, vector<32x128xbf16>, vector<8x128xf32> -> vector<8x128xf32>
    %c0_55 = arith.constant 0 : index
    %c0_56 = arith.constant 0 : index
    %c0_57 = arith.constant 0 : index
    %160 = vector.load %arg12[%c0_55, %c0_56, %c0_57] : memref<1x1x128xf32, #tpu.memory_space<vmem>>, vector<1x1x128xf32>
    %161 = vector.shape_cast %160 : vector<1x1x128xf32> to vector<1x128xf32>
    %162 = vector.broadcast %161 : vector<1x128xf32> to vector<8x128xf32>
    %163 = arith.addf %159, %162 : vector<8x128xf32>
    %cst_58 = arith.constant 5.000000e-01 : f32
    %164 = vector.broadcast %cst_58 : f32 to vector<8x128xf32>
    %165 = arith.mulf %164, %163 : vector<8x128xf32>
    %cst_59 = arith.constant 4.471500e-02 : f32
    %166 = vector.broadcast %cst_59 : f32 to vector<8x128xf32>
    %167 = arith.mulf %166, %163 : vector<8x128xf32>
    %168 = arith.mulf %167, %163 : vector<8x128xf32>
    %169 = arith.mulf %168, %163 : vector<8x128xf32>
    %170 = arith.addf %163, %169 : vector<8x128xf32>
    %cst_60 = arith.constant 0.797884583 : f32
    %171 = vector.broadcast %cst_60 : f32 to vector<8x128xf32>
    %172 = arith.mulf %171, %170 : vector<8x128xf32>
    %173 = math.tanh %172 : vector<8x128xf32>
    %cst_61 = arith.constant 1.000000e+00 : f32
    %174 = vector.broadcast %cst_61 : f32 to vector<8x128xf32>
    %175 = arith.addf %174, %173 : vector<8x128xf32>
    %176 = arith.mulf %165, %175 : vector<8x128xf32>
    %177 = arith.truncf %176 : vector<8x128xf32> to vector<8x128xbf16>
    %c0_62 = arith.constant 0 : index
    %c0_63 = arith.constant 0 : index
    %c0_64 = arith.constant 0 : index
    %178 = vector.load %arg13[%c0_62, %c0_63, %c0_64] : memref<1x128x32xbf16, #tpu.memory_space<vmem>>, vector<1x128x32xbf16>
    %179 = vector.shape_cast %178 : vector<1x128x32xbf16> to vector<128x32xbf16>
    %cst_65 = arith.constant dense<0.000000e+00> : vector<8x32xf32>
    %180 = tpu.matmul %177, %179, %cst_65 {dimension_numbers = #tpu.dot_dimension_numbers<[1], [0], [0], [1], [0, 0, 1, 1], [], []>} : vector<8x128xbf16>, vector<128x32xbf16>, vector<8x32xf32> -> vector<8x32xf32>
    %c0_66 = arith.constant 0 : index
    %c0_67 = arith.constant 0 : index
    %c0_68 = arith.constant 0 : index
    %181 = vector.load %arg14[%c0_66, %c0_67, %c0_68] : memref<1x1x32xf32, #tpu.memory_space<vmem>>, vector<1x1x32xf32>
    %182 = vector.shape_cast %181 : vector<1x1x32xf32> to vector<1x32xf32>
    %183 = vector.broadcast %182 : vector<1x32xf32> to vector<8x32xf32>
    %184 = arith.addf %180, %183 : vector<8x32xf32>
    %185 = arith.addf %129, %184 : vector<8x32xf32>
    %c0_69 = arith.constant 0 : index
    %c0_70 = arith.constant 0 : index
    %186 = vector.load %arg18[%c0_69, %c0_70] : memref<8x32xf32, #tpu.memory_space<vmem>>, vector<8x32xf32>
    tpu.vector_store %arg18[%c0_69, %c0_70], %185 {strides = array<i32>} : memref<8x32xf32, #tpu.memory_space<vmem>>, vector<8x32xf32>,
    %c1_i32 = arith.constant 1 : i32
    %187 = arith.cmpi eq, %arg1, %c1_i32 : i32
    %188 = arith.extui %187 : i1 to i32
    %c0_i32_71 = arith.constant 0 : i32
    %189 = arith.cmpi ne, %188, %c0_i32_71 : i32
    scf.if %189 {
      %c0_72 = arith.constant 0 : index
      %c0_73 = arith.constant 0 : index
      %190 = vector.load %arg15[%c0_72, %c0_73] : memref<1x32xf32, #tpu.memory_space<vmem>>, vector<1x32xf32>
      %c0_74 = arith.constant 0 : index
      %c0_75 = arith.constant 0 : index
      %191 = vector.load %arg16[%c0_74, %c0_75] : memref<1x32xf32, #tpu.memory_space<vmem>>, vector<1x32xf32>
      %cst_76 = arith.constant dense<0.000000e+00> : vector<8xf32>
      %192 = vector.multi_reduction <add>, %185, %cst_76 [1] : vector<8x32xf32> to vector<8xf32>
      %193 = vector.shape_cast %192 : vector<8xf32> to vector<8x1xf32>
      %cst_77 = arith.constant 3.200000e+01 : f32
      %194 = vector.broadcast %cst_77 : f32 to vector<8x1xf32>
      %195 = arith.divf %193, %194 : vector<8x1xf32>
      %196 = vector.broadcast %195 : vector<8x1xf32> to vector<8x32xf32>
      %197 = arith.subf %185, %196 : vector<8x32xf32>
      %198 = arith.mulf %197, %197 : vector<8x32xf32>
      %cst_78 = arith.constant dense<0.000000e+00> : vector<8xf32>
      %199 = vector.multi_reduction <add>, %198, %cst_78 [1] : vector<8x32xf32> to vector<8xf32>
      %200 = vector.shape_cast %199 : vector<8xf32> to vector<8x1xf32>
      %cst_79 = arith.constant 3.200000e+01 : f32
      %201 = vector.broadcast %cst_79 : f32 to vector<8x1xf32>
      %202 = arith.divf %200, %201 : vector<8x1xf32>
      %203 = vector.broadcast %195 : vector<8x1xf32> to vector<8x32xf32>
      %204 = arith.subf %185, %203 : vector<8x32xf32>
      %cst_80 = arith.constant 9.99999974E-6 : f32
      %205 = vector.broadcast %cst_80 : f32 to vector<8x1xf32>
      %206 = arith.addf %202, %205 : vector<8x1xf32>
      %207 = math.rsqrt %206 : vector<8x1xf32>
      %208 = vector.broadcast %207 : vector<8x1xf32> to vector<8x32xf32>
      %209 = arith.mulf %204, %208 : vector<8x32xf32>
      %210 = vector.broadcast %190 : vector<1x32xf32> to vector<8x32xf32>
      %211 = arith.mulf %209, %210 : vector<8x32xf32>
      %212 = vector.broadcast %191 : vector<1x32xf32> to vector<8x32xf32>
      %213 = arith.addf %211, %212 : vector<8x32xf32>
      %c0_81 = arith.constant 0 : index
      %c0_82 = arith.constant 0 : index
      %214 = vector.load %arg17[%c0_81, %c0_82] : memref<8x32xf32, #tpu.memory_space<vmem>>, vector<8x32xf32>
      tpu.vector_store %arg17[%c0_81, %c0_82], %213 {strides = array<i32>} : memref<8x32xf32, #tpu.memory_space<vmem>>, vector<8x32xf32>,
    } else {
    }
    return
  }
  func.func @transform_0(%arg0: i32, %arg1: i32) -> (i32, i32) {
    %c0_i32 = arith.constant 0 : i32
    %c0_i32_0 = arith.constant 0 : i32
    return %arg0, %c0_i32 : i32, i32
  }
  func.func @transform_1(%arg0: i32, %arg1: i32) -> (i32, i32, i32) {
    %c0_i32 = arith.constant 0 : i32
    %c0_i32_0 = arith.constant 0 : i32
    %c0_i32_1 = arith.constant 0 : i32
    return %arg1, %c0_i32, %c0_i32_0 : i32, i32, i32
  }
  func.func @transform_2(%arg0: i32, %arg1: i32) -> (i32, i32, i32) {
    %c0_i32 = arith.constant 0 : i32
    %c0_i32_0 = arith.constant 0 : i32
    %c0_i32_1 = arith.constant 0 : i32
    return %arg1, %c0_i32, %c0_i32_0 : i32, i32, i32
  }
  func.func @transform_3(%arg0: i32, %arg1: i32) -> (i32, i32, i32) {
    %c0_i32 = arith.constant 0 : i32
    %c0_i32_0 = arith.constant 0 : i32
    %c0_i32_1 = arith.constant 0 : i32
    return %arg1, %c0_i32, %c0_i32_0 : i32, i32, i32
  }
  func.func @transform_4(%arg0: i32, %arg1: i32) -> (i32, i32, i32) {
    %c0_i32 = arith.constant 0 : i32
    %c0_i32_0 = arith.constant 0 : i32
    %c0_i32_1 = arith.constant 0 : i32
    return %arg1, %c0_i32, %c0_i32_0 : i32, i32, i32
  }
  func.func @transform_5(%arg0: i32, %arg1: i32) -> (i32, i32, i32) {
    %c0_i32 = arith.constant 0 : i32
    %c0_i32_0 = arith.constant 0 : i32
    %c0_i32_1 = arith.constant 0 : i32
    return %arg1, %c0_i32, %c0_i32_0 : i32, i32, i32
  }
  func.func @transform_6(%arg0: i32, %arg1: i32) -> (i32, i32, i32) {
    %c0_i32 = arith.constant 0 : i32
    %c0_i32_0 = arith.constant 0 : i32
    %c0_i32_1 = arith.constant 0 : i32
    return %arg1, %c0_i32, %c0_i32_0 : i32, i32, i32
  }
  func.func @transform_7(%arg0: i32, %arg1: i32) -> (i32, i32, i32) {
    %c0_i32 = arith.constant 0 : i32
    %c0_i32_0 = arith.constant 0 : i32
    %c0_i32_1 = arith.constant 0 : i32
    return %arg1, %c0_i32, %c0_i32_0 : i32, i32, i32
  }
  func.func @transform_8(%arg0: i32, %arg1: i32) -> (i32, i32, i32) {
    %c0_i32 = arith.constant 0 : i32
    %c0_i32_0 = arith.constant 0 : i32
    %c0_i32_1 = arith.constant 0 : i32
    return %arg1, %c0_i32, %c0_i32_0 : i32, i32, i32
  }
  func.func @transform_9(%arg0: i32, %arg1: i32) -> (i32, i32, i32) {
    %c0_i32 = arith.constant 0 : i32
    %c0_i32_0 = arith.constant 0 : i32
    %c0_i32_1 = arith.constant 0 : i32
    return %arg1, %c0_i32, %c0_i32_0 : i32, i32, i32
  }
  func.func @transform_10(%arg0: i32, %arg1: i32) -> (i32, i32, i32) {
    %c0_i32 = arith.constant 0 : i32
    %c0_i32_0 = arith.constant 0 : i32
    %c0_i32_1 = arith.constant 0 : i32
    return %arg1, %c0_i32, %c0_i32_0 : i32, i32, i32
  }
  func.func @transform_11(%arg0: i32, %arg1: i32) -> (i32, i32, i32) {
    %c0_i32 = arith.constant 0 : i32
    %c0_i32_0 = arith.constant 0 : i32
    %c0_i32_1 = arith.constant 0 : i32
    return %arg1, %c0_i32, %c0_i32_0 : i32, i32, i32
  }
  func.func @transform_12(%arg0: i32, %arg1: i32) -> (i32, i32, i32) {
    %c0_i32 = arith.constant 0 : i32
    %c0_i32_0 = arith.constant 0 : i32
    %c0_i32_1 = arith.constant 0 : i32
    return %arg1, %c0_i32, %c0_i32_0 : i32, i32, i32
  }
  func.func @transform_13(%arg0: i32, %arg1: i32) -> (i32, i32) {
    %c0_i32 = arith.constant 0 : i32
    %c0_i32_0 = arith.constant 0 : i32
    %c0_i32_1 = arith.constant 0 : i32
    return %c0_i32, %c0_i32_0 : i32, i32
  }
  func.func @transform_14(%arg0: i32, %arg1: i32) -> (i32, i32) {
    %c0_i32 = arith.constant 0 : i32
    %c0_i32_0 = arith.constant 0 : i32
    %c0_i32_1 = arith.constant 0 : i32
    return %c0_i32, %c0_i32_0 : i32, i32
  }
  func.func @transform_15(%arg0: i32, %arg1: i32) -> (i32, i32) {
    %c0_i32 = arith.constant 0 : i32
    %c0_i32_0 = arith.constant 0 : i32
    return %arg0, %c0_i32 : i32, i32
  }
}

</mosaic_0001>

<llo_original>
// kernel: tpu_custom_call.1
$region0: #{tpu_custom_call.1}
  #allocation0 [shape = 'u32[]', space=smem, size = 0x4, offset = 0x4, fixed_abs, tag = 'smem constant byte address 0x4 - core index']
  #allocation1 [shape = 'u32[144,128]{1,0:T(1,128)}', space=vmem, size = 0x12000, scoped, tag = 'internal scratch']
  #allocation2 [shape = 'f32[8,32]{1,0:T(8,128)}', space=vmem, size = 0x1000, scoped, tag = 'scratch operand']
  %s0 = inlined_call_operand.vmem [shape: f32[16,32], index: 0, kind: input, shape index: {}]
  %s1 = inlined_call_operand.vmem [shape: f32[2,1,32], index: 1, kind: input, shape index: {}]
  %s2 = inlined_call_operand.vmem [shape: f32[2,1,32], index: 2, kind: input, shape index: {}]
  %s3 = inlined_call_operand.vmem [shape: bf16[2,32,96], index: 3, kind: input, shape index: {}]
  %s4 = inlined_call_operand.vmem [shape: f32[2,1,96], index: 4, kind: input, shape index: {}]
  %s5 = inlined_call_operand.vmem [shape: bf16[2,32,32], index: 5, kind: input, shape index: {}]
  %s6 = inlined_call_operand.vmem [shape: f32[2,1,32], index: 6, kind: input, shape index: {}]
  %s7 = inlined_call_operand.vmem [shape: f32[2,1,32], index: 7, kind: input, shape index: {}]
  %s8 = inlined_call_operand.vmem [shape: f32[2,1,32], index: 8, kind: input, shape index: {}]
  %s9 = inlined_call_operand.vmem [shape: bf16[2,32,128], index: 9, kind: input, shape index: {}]
  %s10 = inlined_call_operand.vmem [shape: f32[2,1,128], index: 10, kind: input, shape index: {}]
  %s11 = inlined_call_operand.vmem [shape: bf16[2,128,32], index: 11, kind: input, shape index: {}]
  %s12 = inlined_call_operand.vmem [shape: f32[2,1,32], index: 12, kind: input, shape index: {}]
  %s13 = inlined_call_operand.vmem [shape: f32[1,32], index: 13, kind: input, shape index: {}]
  %s14 = inlined_call_operand.vmem [shape: f32[1,32], index: 14, kind: input, shape index: {}]
  %s15 = inlined_call_operand.hbm [shape: f32[16,32], index: 15, kind: output, shape index: {}]
  %s16 = sld [smem:[#allocation0]]
  $region101: #{tpu_custom_call.1} parent=0
    _
  %s18 = ssub.s32 1, %s16
  %s19 = scalar_select 0, %s18, %s16
  $region1: #{tpu_custom_call.1} parent=0
    #allocation3 [shape = 'u8[8192]{0}', space=vmem, size = 0x2000, scoped, tag = 'output window, operand 0']
    #allocation4 [shape = 's32[2]{0}', space=sflag, size = 0x8, scoped, tag = 'scoped memory for tpu_custom_call.1']
    %20 = vsyncpa [#allocation4], 0
    %s21 = scalar_lea.sflag [#allocation4], 1
    %22 = vsyncpa %s21, 0
    loop: start=0, step=1, limit=6
    $region2: #{tpu_custom_call.1} parent=1 // loop_pre_header
      _
    $region3: #{tpu_custom_call.1} parent=1 // loop_header
      %s24 = sphi 0, %s28
      %p25 = scmp.ge.s32.totalorder %s24, 6
      %s31 = sphi 0, %s43
      %s32 = sphi 0, %s39
      %s33 = sphi 0, %s31
      %s34 = sphi 0, %s32
      %s35 = sphi 0, %s33
      %s36 = sphi 0, %s34
      %s46 = sphi 0, %s48
      %s49 = sphi 0, %s46
      %s50 = sphi 0, %s49
      %s66 = sphi 0, %s50
      %s72 = sphi 0, %s74
      %s75 = sphi 0, %s72
      %s76 = sphi 0, %s75
      %s92 = sphi 0, %s76
      %s98 = sphi 0, %s100
      %s101 = sphi 0, %s98
      %s102 = sphi 0, %s101
      %s118 = sphi 0, %s102
      %s124 = sphi 0, %s126
      %s127 = sphi 0, %s124
      %s128 = sphi 0, %s127
      %s144 = sphi 0, %s128
      %s150 = sphi 0, %s152
      %s153 = sphi 0, %s150
      %s154 = sphi 0, %s153
      %s170 = sphi 0, %s154
      %s176 = sphi 0, %s178
      %s179 = sphi 0, %s176
      %s180 = sphi 0, %s179
      %s196 = sphi 0, %s180
      %s202 = sphi 0, %s204
      %s205 = sphi 0, %s202
      %s206 = sphi 0, %s205
      %s222 = sphi 0, %s206
      %s228 = sphi 0, %s230
      %s231 = sphi 0, %s228
      %s232 = sphi 0, %s231
      %s248 = sphi 0, %s232
      %s254 = sphi 0, %s256
      %s257 = sphi 0, %s254
      %s258 = sphi 0, %s257
      %s274 = sphi 0, %s258
      %s280 = sphi 0, %s282
      %s283 = sphi 0, %s280
      %s284 = sphi 0, %s283
      %s300 = sphi 0, %s284
      %s306 = sphi 0, %s308
      %s309 = sphi 0, %s306
      %s310 = sphi 0, %s309
      %s326 = sphi 0, %s310
      %s332 = sphi 0, %s334
      %s335 = sphi 0, %s332
      %s336 = sphi 0, %s335
      %s352 = sphi 0, %s336
      %s358 = sphi 0, %s360
      %s361 = sphi 0, %s358
      %s362 = sphi 0, %s361
      %s378 = sphi 0, %s362
      %s382 = sphi 0, %s382
      %s384 = sphi 0, %s382
      %s385 = sphi 0, %s384
      %s399 = sphi 0, %s385
      %s403 = sphi 0, %s403
      %s405 = sphi 0, %s403
      %s406 = sphi 0, %s405
      %s420 = sphi 0, %s406
      %s426 = sphi 0, %s428
      %s429 = sphi 0, %s426
      %s430 = sphi 0, %s429
      %s446 = sphi 0, %s430
    $region4: #{tpu_custom_call.1} parent=1 // loop_header_branch
      %27 = sbr.rel (%p25) target = $region8
    $region5: #{tpu_custom_call.1} parent=1 // loop_body
      %s29 = ssub.s32 %s24, 1
      %s30 = ssub.s32 %s24, 2
      %s37 = sadd.s32 1, %s32
      %p38 = scmp.ge.s32.totalorder %s37, 2
      %s39 = scalar_select %p38, 0, %s37
      %s40 = sadd.s32 1, %s31
      %s41 = scalar_select %p38, %s40, %s31
      %p42 = scmp.ge.s32.totalorder %s41, 2
      %s43 = scalar_select %p42, 0, %s41
      %s44 = ssub.s32 %s31, %s43
      %p45 = scmp.eq.s32.totalorder %s44, 0
      %s47 = sadd.s32 %s46, 1
      %s48 = scalar_select %p45, %s46, %s47
      %p51 = pneg %p45
      %p52 = scmp.eq.s32.totalorder %s24, 3
      %p53 = por %p51, %p52
      %p54 = scmp.ne.s32.totalorder %s46, %s49
      %p55 = scmp.eq.s32.totalorder %s24, 0
      %p56 = por %p54, %p55
      %p57 = scmp.ne.s32.totalorder %s46, %s49
      %p58 = scmp.eq.s32.totalorder %s29, 3
      %p59 = por %p57, %p58
      %p60 = scmp.ne.s32.totalorder %s49, %s50
      %p61 = scmp.eq.s32.totalorder %s29, 0
      %p62 = por %p60, %p61
      %p63 = scmp.ne.s32.totalorder %s49, %s50
      %p64 = scmp.eq.s32.totalorder %s30, 3
      %p65 = por %p63, %p64
      %p67 = scmp.ne.s32.totalorder %s50, %s66
      %p68 = scmp.eq.s32.totalorder %s30, 0
      %p69 = por %p67, %p68
      %s70 = ssub.s32 %s32, %s39
      %p71 = scmp.eq.s32.totalorder %s70, 0
      %s73 = sadd.s32 %s72, 1
      %s74 = scalar_select %p71, %s72, %s73
      %p77 = pneg %p71
      %p78 = scmp.eq.s32.totalorder %s24, 3
      %p79 = por %p77, %p78
      %p80 = scmp.ne.s32.totalorder %s72, %s75
      %p81 = scmp.eq.s32.totalorder %s24, 0
      %p82 = por %p80, %p81
      %p83 = scmp.ne.s32.totalorder %s72, %s75
      %p84 = scmp.eq.s32.totalorder %s29, 3
      %p85 = por %p83, %p84
      %p86 = scmp.ne.s32.totalorder %s75, %s76
      %p87 = scmp.eq.s32.totalorder %s29, 0
      %p88 = por %p86, %p87
      %p89 = scmp.ne.s32.totalorder %s75, %s76
      %p90 = scmp.eq.s32.totalorder %s30, 3
      %p91 = por %p89, %p90
      %p93 = scmp.ne.s32.totalorder %s76, %s92
      %p94 = scmp.eq.s32.totalorder %s30, 0
      %p95 = por %p93, %p94
      %s96 = ssub.s32 %s32, %s39
      %p97 = scmp.eq.s32.totalorder %s96, 0
      %s99 = sadd.s32 %s98, 1
      %s100 = scalar_select %p97, %s98, %s99
      %p103 = pneg %p97
      %p104 = scmp.eq.s32.totalorder %s24, 3
      %p105 = por %p103, %p104
      %p106 = scmp.ne.s32.totalorder %s98, %s101
      %p107 = scmp.eq.s32.totalorder %s24, 0
      %p108 = por %p106, %p107
      %p109 = scmp.ne.s32.totalorder %s98, %s101
      %p110 = scmp.eq.s32.totalorder %s29, 3
      %p111 = por %p109, %p110
      %p112 = scmp.ne.s32.totalorder %s101, %s102
      %p113 = scmp.eq.s32.totalorder %s29, 0
      %p114 = por %p112, %p113
      %p115 = scmp.ne.s32.totalorder %s101, %s102
      %p116 = scmp.eq.s32.totalorder %s30, 3
      %p117 = por %p115, %p116
      %p119 = scmp.ne.s32.totalorder %s102, %s118
      %p120 = scmp.eq.s32.totalorder %s30, 0
      %p121 = por %p119, %p120
      %s122 = ssub.s32 %s32, %s39
      %p123 = scmp.eq.s32.totalorder %s122, 0
      %s125 = sadd.s32 %s124, 1
      %s126 = scalar_select %p123, %s124, %s125
      %p129 = pneg %p123
      %p130 = scmp.eq.s32.totalorder %s24, 3
      %p131 = por %p129, %p130
      %p132 = scmp.ne.s32.totalorder %s124, %s127
      %p133 = scmp.eq.s32.totalorder %s24, 0
      %p134 = por %p132, %p133
      %p135 = scmp.ne.s32.totalorder %s124, %s127
      %p136 = scmp.eq.s32.totalorder %s29, 3
      %p137 = por %p135, %p136
      %p138 = scmp.ne.s32.totalorder %s127, %s128
      %p139 = scmp.eq.s32.totalorder %s29, 0
      %p140 = por %p138, %p139
      %p141 = scmp.ne.s32.totalorder %s127, %s128
      %p142 = scmp.eq.s32.totalorder %s30, 3
      %p143 = por %p141, %p142
      %p145 = scmp.ne.s32.totalorder %s128, %s144
      %p146 = scmp.eq.s32.totalorder %s30, 0
      %p147 = por %p145, %p146
      %s148 = ssub.s32 %s32, %s39
      %p149 = scmp.eq.s32.totalorder %s148, 0
      %s151 = sadd.s32 %s150, 1
      %s152 = scalar_select %p149, %s150, %s151
      %p155 = pneg %p149
      %p156 = scmp.eq.s32.totalorder %s24, 3
      %p157 = por %p155, %p156
      %p158 = scmp.ne.s32.totalorder %s150, %s153
      %p159 = scmp.eq.s32.totalorder %s24, 0
      %p160 = por %p158, %p159
      %p161 = scmp.ne.s32.totalorder %s150, %s153
      %p162 = scmp.eq.s32.totalorder %s29, 3
      %p163 = por %p161, %p162
      %p164 = scmp.ne.s32.totalorder %s153, %s154
      %p165 = scmp.eq.s32.totalorder %s29, 0
      %p166 = por %p164, %p165
      %p167 = scmp.ne.s32.totalorder %s153, %s154
      %p168 = scmp.eq.s32.totalorder %s30, 3
      %p169 = por %p167, %p168
      %p171 = scmp.ne.s32.totalorder %s154, %s170
      %p172 = scmp.eq.s32.totalorder %s30, 0
      %p173 = por %p171, %p172
      %s174 = ssub.s32 %s32, %s39
      %p175 = scmp.eq.s32.totalorder %s174, 0
      %s177 = sadd.s32 %s176, 1
      %s178 = scalar_select %p175, %s176, %s177
      %p181 = pneg %p175
      %p182 = scmp.eq.s32.totalorder %s24, 3
      %p183 = por %p181, %p182
      %p184 = scmp.ne.s32.totalorder %s176, %s179
      %p185 = scmp.eq.s32.totalorder %s24, 0
      %p186 = por %p184, %p185
      %p187 = scmp.ne.s32.totalorder %s176, %s179
      %p188 = scmp.eq.s32.totalorder %s29, 3
      %p189 = por %p187, %p188
      %p190 = scmp.ne.s32.totalorder %s179, %s180
      %p191 = scmp.eq.s32.totalorder %s29, 0
      %p192 = por %p190, %p191
      %p193 = scmp.ne.s32.totalorder %s179, %s180
      %p194 = scmp.eq.s32.totalorder %s30, 3
      %p195 = por %p193, %p194
      %p197 = scmp.ne.s32.totalorder %s180, %s196
      %p198 = scmp.eq.s32.totalorder %s30, 0
      %p199 = por %p197, %p198
      %s200 = ssub.s32 %s32, %s39
      %p201 = scmp.eq.s32.totalorder %s200, 0
      %s203 = sadd.s32 %s202, 1
      %s204 = scalar_select %p201, %s202, %s203
      %p207 = pneg %p201
      %p208 = scmp.eq.s32.totalorder %s24, 3
      %p209 = por %p207, %p208
      %p210 = scmp.ne.s32.totalorder %s202, %s205
      %p211 = scmp.eq.s32.totalorder %s24, 0
      %p212 = por %p210, %p211
      %p213 = scmp.ne.s32.totalorder %s202, %s205
      %p214 = scmp.eq.s32.totalorder %s29, 3
      %p215 = por %p213, %p214
      %p216 = scmp.ne.s32.totalorder %s205, %s206
      %p217 = scmp.eq.s32.totalorder %s29, 0
      %p218 = por %p216, %p217
      %p219 = scmp.ne.s32.totalorder %s205, %s206
      %p220 = scmp.eq.s32.totalorder %s30, 3
      %p221 = por %p219, %p220
      %p223 = scmp.ne.s32.totalorder %s206, %s222
      %p224 = scmp.eq.s32.totalorder %s30, 0
      %p225 = por %p223, %p224
      %s226 = ssub.s32 %s32, %s39
      %p227 = scmp.eq.s32.totalorder %s226, 0
      %s229 = sadd.s32 %s228, 1
      %s230 = scalar_select %p227, %s228, %s229
      %p233 = pneg %p227
      %p234 = scmp.eq.s32.totalorder %s24, 3
      %p235 = por %p233, %p234
      %p236 = scmp.ne.s32.totalorder %s228, %s231
      %p237 = scmp.eq.s32.totalorder %s24, 0
      %p238 = por %p236, %p237
      %p239 = scmp.ne.s32.totalorder %s228, %s231
      %p240 = scmp.eq.s32.totalorder %s29, 3
      %p241 = por %p239, %p240
      %p242 = scmp.ne.s32.totalorder %s231, %s232
      %p243 = scmp.eq.s32.totalorder %s29, 0
      %p244 = por %p242, %p243
      %p245 = scmp.ne.s32.totalorder %s231, %s232
      %p246 = scmp.eq.s32.totalorder %s30, 3
      %p247 = por %p245, %p246
      %p249 = scmp.ne.s32.totalorder %s232, %s248
      %p250 = scmp.eq.s32.totalorder %s30, 0
      %p251 = por %p249, %p250
      %s252 = ssub.s32 %s32, %s39
      %p253 = scmp.eq.s32.totalorder %s252, 0
      %s255 = sadd.s32 %s254, 1
      %s256 = scalar_select %p253, %s254, %s255
      %p259 = pneg %p253
      %p260 = scmp.eq.s32.totalorder %s24, 3
      %p261 = por %p259, %p260
      %p262 = scmp.ne.s32.totalorder %s254, %s257
      %p263 = scmp.eq.s32.totalorder %s24, 0
      %p264 = por %p262, %p263
      %p265 = scmp.ne.s32.totalorder %s254, %s257
      %p266 = scmp.eq.s32.totalorder %s29, 3
      %p267 = por %p265, %p266
      %p268 = scmp.ne.s32.totalorder %s257, %s258
      %p269 = scmp.eq.s32.totalorder %s29, 0
      %p270 = por %p268, %p269
      %p271 = scmp.ne.s32.totalorder %s257, %s258
      %p272 = scmp.eq.s32.totalorder %s30, 3
      %p273 = por %p271, %p272
      %p275 = scmp.ne.s32.totalorder %s258, %s274
      %p276 = scmp.eq.s32.totalorder %s30, 0
      %p277 = por %p275, %p276
      %s278 = ssub.s32 %s32, %s39
      %p279 = scmp.eq.s32.totalorder %s278, 0
      %s281 = sadd.s32 %s280, 1
      %s282 = scalar_select %p279, %s280, %s281
      %p285 = pneg %p279
      %p286 = scmp.eq.s32.totalorder %s24, 3
      %p287 = por %p285, %p286
      %p288 = scmp.ne.s32.totalorder %s280, %s283
      %p289 = scmp.eq.s32.totalorder %s24, 0
      %p290 = por %p288, %p289
      %p291 = scmp.ne.s32.totalorder %s280, %s283
      %p292 = scmp.eq.s32.totalorder %s29, 3
      %p293 = por %p291, %p292
      %p294 = scmp.ne.s32.totalorder %s283, %s284
      %p295 = scmp.eq.s32.totalorder %s29, 0
      %p296 = por %p294, %p295
      %p297 = scmp.ne.s32.totalorder %s283, %s284
      %p298 = scmp.eq.s32.totalorder %s30, 3
      %p299 = por %p297, %p298
      %p301 = scmp.ne.s32.totalorder %s284, %s300
      %p302 = scmp.eq.s32.totalorder %s30, 0
      %p303 = por %p301, %p302
      %s304 = ssub.s32 %s32, %s39
      %p305 = scmp.eq.s32.totalorder %s304, 0
      %s307 = sadd.s32 %s306, 1
      %s308 = scalar_select %p305, %s306, %s307
      %p311 = pneg %p305
      %p312 = scmp.eq.s32.totalorder %s24, 3
      %p313 = por %p311, %p312
      %p314 = scmp.ne.s32.totalorder %s306, %s309
      %p315 = scmp.eq.s32.totalorder %s24, 0
      %p316 = por %p314, %p315
      %p317 = scmp.ne.s32.totalorder %s306, %s309
      %p318 = scmp.eq.s32.totalorder %s29, 3
      %p319 = por %p317, %p318
      %p320 = scmp.ne.s32.totalorder %s309, %s310
      %p321 = scmp.eq.s32.totalorder %s29, 0
      %p322 = por %p320, %p321
      %p323 = scmp.ne.s32.totalorder %s309, %s310
      %p324 = scmp.eq.s32.totalorder %s30, 3
      %p325 = por %p323, %p324
      %p327 = scmp.ne.s32.totalorder %s310, %s326
      %p328 = scmp.eq.s32.totalorder %s30, 0
      %p329 = por %p327, %p328
      %s330 = ssub.s32 %s32, %s39
      %p331 = scmp.eq.s32.totalorder %s330, 0
      %s333 = sadd.s32 %s332, 1
      %s334 = scalar_select %p331, %s332, %s333
      %p337 = pneg %p331
      %p338 = scmp.eq.s32.totalorder %s24, 3
      %p339 = por %p337, %p338
      %p340 = scmp.ne.s32.totalorder %s332, %s335
      %p341 = scmp.eq.s32.totalorder %s24, 0
      %p342 = por %p340, %p341
      %p343 = scmp.ne.s32.totalorder %s332, %s335
      %p344 = scmp.eq.s32.totalorder %s29, 3
      %p345 = por %p343, %p344
      %p346 = scmp.ne.s32.totalorder %s335, %s336
      %p347 = scmp.eq.s32.totalorder %s29, 0
      %p348 = por %p346, %p347
      %p349 = scmp.ne.s32.totalorder %s335, %s336
      %p350 = scmp.eq.s32.totalorder %s30, 3
      %p351 = por %p349, %p350
      %p353 = scmp.ne.s32.totalorder %s336, %s352
      %p354 = scmp.eq.s32.totalorder %s30, 0
      %p355 = por %p353, %p354
      %s356 = ssub.s32 %s32, %s39
      %p357 = scmp.eq.s32.totalorder %s356, 0
      %s359 = sadd.s32 %s358, 1
      %s360 = scalar_select %p357, %s358, %s359
      %p363 = pneg %p357
      %p364 = scmp.eq.s32.totalorder %s24, 3
      %p365 = por %p363, %p364
      %p366 = scmp.ne.s32.totalorder %s358, %s361
      %p367 = scmp.eq.s32.totalorder %s24, 0
      %p368 = por %p366, %p367
      %p369 = scmp.ne.s32.totalorder %s358, %s361
      %p370 = scmp.eq.s32.totalorder %s29, 3
      %p371 = por %p369, %p370
      %p372 = scmp.ne.s32.totalorder %s361, %s362
      %p373 = scmp.eq.s32.totalorder %s29, 0
      %p374 = por %p372, %p373
      %p375 = scmp.ne.s32.totalorder %s361, %s362
      %p376 = scmp.eq.s32.totalorder %s30, 3
      %p377 = por %p375, %p376
      %p379 = scmp.ne.s32.totalorder %s362, %s378
      %p380 = scmp.eq.s32.totalorder %s30, 0
      %p381 = por %p379, %p380
      %s383 = sadd.s32 %s382, 1
      %p386 = scmp.eq.s32.totalorder %s24, 3
      %p387 = scmp.ne.s32.totalorder %s382, %s384
      %p388 = scmp.eq.s32.totalorder %s24, 0
      %p389 = por %p387, %p388
      %p390 = scmp.ne.s32.totalorder %s382, %s384
      %p391 = scmp.eq.s32.totalorder %s29, 3
      %p392 = por %p390, %p391
      %p393 = scmp.ne.s32.totalorder %s384, %s385
      %p394 = scmp.eq.s32.totalorder %s29, 0
      %p395 = por %p393, %p394
      %p396 = scmp.ne.s32.totalorder %s384, %s385
      %p397 = scmp.eq.s32.totalorder %s30, 3
      %p398 = por %p396, %p397
      %p400 = scmp.ne.s32.totalorder %s385, %s399
      %p401 = scmp.eq.s32.totalorder %s30, 0
      %p402 = por %p400, %p401
      %s404 = sadd.s32 %s403, 1
      %p407 = scmp.eq.s32.totalorder %s24, 3
      %p408 = scmp.ne.s32.totalorder %s403, %s405
      %p409 = scmp.eq.s32.totalorder %s24, 0
      %p410 = por %p408, %p409
      %p411 = scmp.ne.s32.totalorder %s403, %s405
      %p412 = scmp.eq.s32.totalorder %s29, 3
      %p413 = por %p411, %p412
      %p414 = scmp.ne.s32.totalorder %s405, %s406
      %p415 = scmp.eq.s32.totalorder %s29, 0
      %p416 = por %p414, %p415
      %p417 = scmp.ne.s32.totalorder %s405, %s406
      %p418 = scmp.eq.s32.totalorder %s30, 3
      %p419 = por %p417, %p418
      %p421 = scmp.ne.s32.totalorder %s406, %s420
      %p422 = scmp.eq.s32.totalorder %s30, 0
      %p423 = por %p421, %p422
      %s424 = ssub.s32 %s31, %s43
      %p425 = scmp.eq.s32.totalorder %s424, 0
      %s427 = sadd.s32 %s426, 1
      %s428 = scalar_select %p425, %s426, %s427
      %p431 = pneg %p425
      %p432 = scmp.eq.s32.totalorder %s24, 3
      %p433 = por %p431, %p432
      %p434 = scmp.ne.s32.totalorder %s426, %s429
      %p435 = scmp.eq.s32.totalorder %s24, 0
      %p436 = por %p434, %p435
      %p437 = scmp.ne.s32.totalorder %s426, %s429
      %p438 = scmp.eq.s32.totalorder %s29, 3
      %p439 = por %p437, %p438
      %p440 = scmp.ne.s32.totalorder %s429, %s430
      %p441 = scmp.eq.s32.totalorder %s29, 0
      %p442 = por %p440, %p441
      %p443 = scmp.ne.s32.totalorder %s429, %s430
      %p444 = scmp.eq.s32.totalorder %s30, 3
      %p445 = por %p443, %p444
      %p447 = scmp.ne.s32.totalorder %s430, %s446
      %p448 = scmp.eq.s32.totalorder %s30, 0
      %p449 = por %p447, %p448
      %p450 = scmp.le.s32.totalorder 1, %s24
      %p451 = scmp.lt.s32.totalorder %s24, 5
      %p452 = pnand %p450, %p451
      %p453 = pneg %p452
      // Predicated region
      $region9: #{tpu_custom_call.1} parent=5 // pred_check
        _
      $region10: #{tpu_custom_call.1} parent=5 // pred_check_branch
        %455 = sbr.rel (%p452) target = $region12
      $region11: #{tpu_custom_call.1} parent=5 // pred_region
        %s456 = ssub.s32 %s24, 1
        // Predicated region
        $region13: #{tpu_custom_call.1} parent=11 // pred_check
          %p457 = pneg %p395
        $region14: #{tpu_custom_call.1} parent=11 // pred_check_branch
          %459 = sbr.rel (%p457) target = $region16
        $region15: #{tpu_custom_call.1} parent=11 // pred_region
          _
        $region16: #{tpu_custom_call.1} parent=11 // pred_fallthru
          _
        // Predicated region
        $region17: #{tpu_custom_call.1} parent=11 // pred_check
          %p460 = pneg %p416
        $region18: #{tpu_custom_call.1} parent=11 // pred_check_branch
          %462 = sbr.rel (%p460) target = $region20
        $region19: #{tpu_custom_call.1} parent=11 // pred_region
          _
        $region20: #{tpu_custom_call.1} parent=11 // pred_fallthru
          _
      $region12: #{tpu_custom_call.1} parent=5 // pred_fallthru
        _
      %p463 = scmp.lt.s32.totalorder %s24, 4
      // Predicated region
      $region21: #{tpu_custom_call.1} parent=5 // pred_check
        %p464 = pneg %p463
      $region22: #{tpu_custom_call.1} parent=5 // pred_check_branch
        %466 = sbr.rel (%p464) target = $region24
      $region23: #{tpu_custom_call.1} parent=5 // pred_region
        // Predicated region
        $region25: #{tpu_custom_call.1} parent=23 // pred_check
          %p467 = pneg %p56
        $region26: #{tpu_custom_call.1} parent=23 // pred_check_branch
          %469 = sbr.rel (%p467) target = $region28
        $region27: #{tpu_custom_call.1} parent=23 // pred_region
          %p470 = scmp.lt.s32.totalorder %s31, 1
          %s471 = scalar_select %p470, %s31, 1
          %s472 = smul.addr %s471, 8
          %s473 = scalar_lea.vmem %s0, %s472
        $region28: #{tpu_custom_call.1} parent=23 // pred_fallthru
          _
        // Predicated region
        $region29: #{tpu_custom_call.1} parent=23 // pred_check
          %p474 = pneg %p82
        $region30: #{tpu_custom_call.1} parent=23 // pred_check_branch
          %476 = sbr.rel (%p474) target = $region32
        $region31: #{tpu_custom_call.1} parent=23 // pred_region
          %p477 = scmp.lt.s32.totalorder %s32, 1
          %s478 = scalar_select %p477, %s32, 1
          %s479 = scalar_lea.vmem %s1, %s478
        $region32: #{tpu_custom_call.1} parent=23 // pred_fallthru
          _
        // Predicated region
        $region33: #{tpu_custom_call.1} parent=23 // pred_check
          %p480 = pneg %p108
        $region34: #{tpu_custom_call.1} parent=23 // pred_check_branch
          %482 = sbr.rel (%p480) target = $region36
        $region35: #{tpu_custom_call.1} parent=23 // pred_region
          %p483 = scmp.lt.s32.totalorder %s32, 1
          %s484 = scalar_select %p483, %s32, 1
          %s485 = scalar_lea.vmem %s2, %s484
        $region36: #{tpu_custom_call.1} parent=23 // pred_fallthru
          _
        // Predicated region
        $region37: #{tpu_custom_call.1} parent=23 // pred_check
          %p486 = pneg %p134
        $region38: #{tpu_custom_call.1} parent=23 // pred_check_branch
          %488 = sbr.rel (%p486) target = $region40
        $region39: #{tpu_custom_call.1} parent=23 // pred_region
          %p489 = scmp.lt.s32.totalorder %s32, 1
          %s490 = scalar_select %p489, %s32, 1
          %s491 = smul.addr %s490, 4
          %s492 = smul.addr %s491, 4
          %s493 = scalar_lea.vmem %s3, %s492
        $region40: #{tpu_custom_call.1} parent=23 // pred_fallthru
          _
        // Predicated region
        $region41: #{tpu_custom_call.1} parent=23 // pred_check
          %p494 = pneg %p160
        $region42: #{tpu_custom_call.1} parent=23 // pred_check_branch
          %496 = sbr.rel (%p494) target = $region44
        $region43: #{tpu_custom_call.1} parent=23 // pred_region
          %p497 = scmp.lt.s32.totalorder %s32, 1
          %s498 = scalar_select %p497, %s32, 1
          %s499 = scalar_lea.vmem %s4, %s498
        $region44: #{tpu_custom_call.1} parent=23 // pred_fallthru
          _
        // Predicated region
        $region45: #{tpu_custom_call.1} parent=23 // pred_check
          %p500 = pneg %p186
        $region46: #{tpu_custom_call.1} parent=23 // pred_check_branch
          %502 = sbr.rel (%p500) target = $region48
        $region47: #{tpu_custom_call.1} parent=23 // pred_region
          %p503 = scmp.lt.s32.totalorder %s32, 1
          %s504 = scalar_select %p503, %s32, 1
          %s505 = smul.addr %s504, 4
          %s506 = smul.addr %s505, 4
          %s507 = scalar_lea.vmem %s5, %s506
        $region48: #{tpu_custom_call.1} parent=23 // pred_fallthru
          _
        // Predicated region
        $region49: #{tpu_custom_call.1} parent=23 // pred_check
          %p508 = pneg %p212
        $region50: #{tpu_custom_call.1} parent=23 // pred_check_branch
          %510 = sbr.rel (%p508) target = $region52
        $region51: #{tpu_custom_call.1} parent=23 // pred_region
          %p511 = scmp.lt.s32.totalorder %s32, 1
          %s512 = scalar_select %p511, %s32, 1
          %s513 = scalar_lea.vmem %s6, %s512
        $region52: #{tpu_custom_call.1} parent=23 // pred_fallthru
          _
        // Predicated region
        $region53: #{tpu_custom_call.1} parent=23 // pred_check
          %p514 = pneg %p238
        $region54: #{tpu_custom_call.1} parent=23 // pred_check_branch
          %516 = sbr.rel (%p514) target = $region56
        $region55: #{tpu_custom_call.1} parent=23 // pred_region
          %p517 = scmp.lt.s32.totalorder %s32, 1
          %s518 = scalar_select %p517, %s32, 1
          %s519 = scalar_lea.vmem %s7, %s518
        $region56: #{tpu_custom_call.1} parent=23 // pred_fallthru
          _
        // Predicated region
        $region57: #{tpu_custom_call.1} parent=23 // pred_check
          %p520 = pneg %p264
        $region58: #{tpu_custom_call.1} parent=23 // pred_check_branch
          %522 = sbr.rel (%p520) target = $region60
        $region59: #{tpu_custom_call.1} parent=23 // pred_region
          %p523 = scmp.lt.s32.totalorder %s32, 1
          %s524 = scalar_select %p523, %s32, 1
          %s525 = scalar_lea.vmem %s8, %s524
        $region60: #{tpu_custom_call.1} parent=23 // pred_fallthru
          _
        // Predicated region
        $region61: #{tpu_custom_call.1} parent=23 // pred_check
          %p526 = pneg %p290
        $region62: #{tpu_custom_call.1} parent=23 // pred_check_branch
          %528 = sbr.rel (%p526) target = $region64
        $region63: #{tpu_custom_call.1} parent=23 // pred_region
          %p529 = scmp.lt.s32.totalorder %s32, 1
          %s530 = scalar_select %p529, %s32, 1
          %s531 = smul.addr %s530, 4
          %s532 = smul.addr %s531, 4
          %s533 = scalar_lea.vmem %s9, %s532
        $region64: #{tpu_custom_call.1} parent=23 // pred_fallthru
          _
        // Predicated region
        $region65: #{tpu_custom_call.1} parent=23 // pred_check
          %p534 = pneg %p316
        $region66: #{tpu_custom_call.1} parent=23 // pred_check_branch
          %536 = sbr.rel (%p534) target = $region68
        $region67: #{tpu_custom_call.1} parent=23 // pred_region
          %p537 = scmp.lt.s32.totalorder %s32, 1
          %s538 = scalar_select %p537, %s32, 1
          %s539 = scalar_lea.vmem %s10, %s538
        $region68: #{tpu_custom_call.1} parent=23 // pred_fallthru
          _
        // Predicated region
        $region69: #{tpu_custom_call.1} parent=23 // pred_check
          %p540 = pneg %p342
        $region70: #{tpu_custom_call.1} parent=23 // pred_check_branch
          %542 = sbr.rel (%p540) target = $region72
        $region71: #{tpu_custom_call.1} parent=23 // pred_region
          %p543 = scmp.lt.s32.totalorder %s32, 1
          %s544 = scalar_select %p543, %s32, 1
          %s545 = smul.addr %s544, 16
          %s546 = smul.addr %s545, 4
          %s547 = scalar_lea.vmem %s11, %s546
        $region72: #{tpu_custom_call.1} parent=23 // pred_fallthru
          _
        // Predicated region
        $region73: #{tpu_custom_call.1} parent=23 // pred_check
          %p548 = pneg %p368
        $region74: #{tpu_custom_call.1} parent=23 // pred_check_branch
          %550 = sbr.rel (%p548) target = $region76
        $region75: #{tpu_custom_call.1} parent=23 // pred_region
          %p551 = scmp.lt.s32.totalorder %s32, 1
          %s552 = scalar_select %p551, %s32, 1
          %s553 = scalar_lea.vmem %s12, %s552
        $region76: #{tpu_custom_call.1} parent=23 // pred_fallthru
          _
      $region24: #{tpu_custom_call.1} parent=5 // pred_fallthru
        _
      %p554 = scmp.le.s32.totalorder 1, %s24
      %p555 = scmp.lt.s32.totalorder %s24, 5
      %p556 = pnand %p554, %p555
      %p557 = pneg %p556
      // Predicated region
      $region77: #{tpu_custom_call.1} parent=5 // pred_check
        _
      $region78: #{tpu_custom_call.1} parent=5 // pred_check_branch
        %559 = sbr.rel (%p556) target = $region80
      $region79: #{tpu_custom_call.1} parent=5 // pred_region
        %s560 = ssub.s32 %s24, 1
        %p561 = scmp.lt.s32.totalorder %s33, 1
        %s562 = scalar_select %p561, %s33, 1
        %s563 = smul.addr %s562, 8
        %s564 = scalar_lea.vmem %s0, %s563
        %p565 = pneg %p62
        %p566 = pneg %p59
        %p567 = scmp.lt.s32.totalorder %s34, 1
        %s568 = scalar_select %p567, %s34, 1
        %s569 = scalar_lea.vmem %s1, %s568
        %p570 = pneg %p88
        %p571 = pneg %p85
        %p572 = scmp.lt.s32.totalorder %s34, 1
        %s573 = scalar_select %p572, %s34, 1
        %s574 = scalar_lea.vmem %s2, %s573
        %p575 = pneg %p114
        %p576 = pneg %p111
        %p577 = scmp.lt.s32.totalorder %s34, 1
        %s578 = scalar_select %p577, %s34, 1
        %s579 = smul.addr %s578, 4
        %s580 = smul.addr %s579, 4
        %s581 = scalar_lea.vmem %s3, %s580
        %p582 = pneg %p140
        %p583 = pneg %p137
        %p584 = scmp.lt.s32.totalorder %s34, 1
        %s585 = scalar_select %p584, %s34, 1
        %s586 = scalar_lea.vmem %s4, %s585
        %p587 = pneg %p166
        %p588 = pneg %p163
        %p589 = scmp.lt.s32.totalorder %s34, 1
        %s590 = scalar_select %p589, %s34, 1
        %s591 = smul.addr %s590, 4
        %s592 = smul.addr %s591, 4
        %s593 = scalar_lea.vmem %s5, %s592
        %p594 = pneg %p192
        %p595 = pneg %p189
        %p596 = scmp.lt.s32.totalorder %s34, 1
        %s597 = scalar_select %p596, %s34, 1
        %s598 = scalar_lea.vmem %s6, %s597
        %p599 = pneg %p218
        %p600 = pneg %p215
        %p601 = scmp.lt.s32.totalorder %s34, 1
        %s602 = scalar_select %p601, %s34, 1
        %s603 = scalar_lea.vmem %s7, %s602
        %p604 = pneg %p244
        %p605 = pneg %p241
        %p606 = scmp.lt.s32.totalorder %s34, 1
        %s607 = scalar_select %p606, %s34, 1
        %s608 = scalar_lea.vmem %s8, %s607
        %p609 = pneg %p270
        %p610 = pneg %p267
        %p611 = scmp.lt.s32.totalorder %s34, 1
        %s612 = scalar_select %p611, %s34, 1
        %s613 = smul.addr %s612, 4
        %s614 = smul.addr %s613, 4
        %s615 = scalar_lea.vmem %s9, %s614
        %p616 = pneg %p296
        %p617 = pneg %p293
        %p618 = scmp.lt.s32.totalorder %s34, 1
        %s619 = scalar_select %p618, %s34, 1
        %s620 = scalar_lea.vmem %s10, %s619
        %p621 = pneg %p322
        %p622 = pneg %p319
        %p623 = scmp.lt.s32.totalorder %s34, 1
        %s624 = scalar_select %p623, %s34, 1
        %s625 = smul.addr %s624, 16
        %s626 = smul.addr %s625, 4
        %s627 = scalar_lea.vmem %s11, %s626
        %p628 = pneg %p348
        %p629 = pneg %p345
        %p630 = scmp.lt.s32.totalorder %s34, 1
        %s631 = scalar_select %p630, %s34, 1
        %s632 = scalar_lea.vmem %s12, %s631
        %p633 = pneg %p374
        %p634 = pneg %p371
        %p635 = pneg %p395
        %p636 = pneg %p392
        %p637 = pneg %p416
        %p638 = pneg %p413
        %p639 = pneg %p442
        %p640 = pneg %p439
        %s641 = sand.u32 %s429, 1
        %s642 = scalar_lea.sflag [#allocation4], %s641
        %s643 = sand.u32 %s429, 1
        %s644 = smul.addr %s643, 8
        %s645 = scalar_lea.vmem [#allocation3], %s644
        %p646 = scmp.lt.s32.totalorder %s33, 1
        %s647 = scalar_select %p646, %s33, 1
        %s648 = smul.addr %s647, 8
        %s649 = scalar_lea.vmem %s0, %s648
        %p650 = scmp.lt.s32.totalorder %s34, 1
        %s651 = scalar_select %p650, %s34, 1
        %s652 = scalar_lea.vmem %s1, %s651
        %p653 = scmp.lt.s32.totalorder %s34, 1
        %s654 = scalar_select %p653, %s34, 1
        %s655 = scalar_lea.vmem %s2, %s654
        %p656 = scmp.lt.s32.totalorder %s34, 1
        %s657 = scalar_select %p656, %s34, 1
        %s658 = smul.addr %s657, 4
        %s659 = smul.addr %s658, 4
        %s660 = scalar_lea.vmem %s3, %s659
        %p661 = scmp.lt.s32.totalorder %s34, 1
        %s662 = scalar_select %p661, %s34, 1
        %s663 = scalar_lea.vmem %s4, %s662
        %p664 = scmp.lt.s32.totalorder %s34, 1
        %s665 = scalar_select %p664, %s34, 1
        %s666 = smul.addr %s665, 4
        %s667 = smul.addr %s666, 4
        %s668 = scalar_lea.vmem %s5, %s667
        %p669 = scmp.lt.s32.totalorder %s34, 1
        %s670 = scalar_select %p669, %s34, 1
        %s671 = scalar_lea.vmem %s6, %s670
        %p672 = scmp.lt.s32.totalorder %s34, 1
        %s673 = scalar_select %p672, %s34, 1
        %s674 = scalar_lea.vmem %s7, %s673
        %p675 = scmp.lt.s32.totalorder %s34, 1
        %s676 = scalar_select %p675, %s34, 1
        %s677 = scalar_lea.vmem %s8, %s676
        %p678 = scmp.lt.s32.totalorder %s34, 1
        %s679 = scalar_select %p678, %s34, 1
        %s680 = smul.addr %s679, 4
        %s681 = smul.addr %s680, 4
        %s682 = scalar_lea.vmem %s9, %s681
        %p683 = scmp.lt.s32.totalorder %s34, 1
        %s684 = scalar_select %p683, %s34, 1
        %s685 = scalar_lea.vmem %s10, %s684
        %p686 = scmp.lt.s32.totalorder %s34, 1
        %s687 = scalar_select %p686, %s34, 1
        %s688 = smul.addr %s687, 16
        %s689 = smul.addr %s688, 4
        %s690 = scalar_lea.vmem %s11, %s689
        %p691 = scmp.lt.s32.totalorder %s34, 1
        %s692 = scalar_select %p691, %s34, 1
        %s693 = scalar_lea.vmem %s12, %s692
        %p695 = scmp.eq.s32.totalorder %s34, 0
        // Predicated region
        $region81: #{tpu_custom_call.1} parent=79 // pred_check
          %p696 = pneg %p695
        $region82: #{tpu_custom_call.1} parent=79 // pred_check_branch
          %698 = sbr.rel (%p696) target = $region84
        $region83: #{tpu_custom_call.1} parent=79 // pred_region
          %v699 = vld [vmem:[%s649] sm:$0xff]
          %vm700 = vcmask 261120
          %701 = vst.msk [vmem:[#allocation2] sm:$0xff] %vm700, %v699
        $region84: #{tpu_custom_call.1} parent=79 // pred_fallthru
          _
        %v702 = vld [vmem:[#allocation2] sm:$0xff]
        %v703 = vld [vmem:[%s652] sm:$0x1]
        %v704 = vld [vmem:[%s655] sm:$0x1]
        %vm705 = vcmask 261120
        %v706 = vsel %vm705, %v702, 0.0
        %707 = vadd.xlane.f32.xlu0 %v706
        %v708 = vpop.xlane.xlu0 %707
        %v709 = vrcp.pop 32.0
        %v710 = vmul.f32 %v708, %v709
        %v711 = vsub.f32 %v702, %v710
        %v712 = vmul.f32 %v711, %v711
        %v713 = vsel %vm705, %v712, 0.0
        %714 = vadd.xlane.f32.xlu0 %v713
        %v715 = vpop.xlane.xlu0 %714
        %v716 = vmul.f32 %v715, %v709
        %v717 = vadd.f32 %v716, 1e-05
        %v718 = vrsqrt.pop %v717
        %v719 = vmul.f32 %v711, %v718
        %v721 = vlaneseq
        %v722 = vshrl.u32 %v721, 7
        %v723 = vsub.s32 0, %v722
        %v724 = vrot.slane %v703, %v723
        %v726 = vmul.f32 %v719, %v724
        %v728 = vlaneseq
        %v729 = vshrl.u32 %v728, 7
        %v730 = vsub.s32 0, %v729
        %v731 = vrot.slane %v704, %v730
        %v733 = vadd.f32 %v726, %v731
        %v734 = vpack.c.bf16 %v733, %v733
        %v735 = vld [vmem:[%s660] sm:$0xf]
        %v736 = vld [vmem:[%s660 + $0x4] sm:$0xf]
        %v737 = vld [vmem:[%s660 + $0x8] sm:$0xf]
        %v738 = vld [vmem:[%s660 + $0xc] sm:$0xf]
        %v739 = vld [vmem:[%s663] sm:$0x1]
        %v741 = vlaneseq
        %v742 = vshrl.u32 %v741, 7
        %v743 = vsub.s32 0, %v742
        %v744 = vrot.slane %v739, %v743
        %v750 = vunpack.c.l.b16 %v735
        %v751 = vunpack.c.l.b16 %v736
        %v752 = vunpack.c.l.b16 %v737
        %v753 = vunpack.c.l.b16 %v738
        %v754 = vpack.c.b16 %v751, %v750
        %v755 = vpack.c.b16 %v753, %v752
        %v759 = vsel %vm705, %v734, 0
        %761 = vmatprep.subr.bf16.mxu0 0
        %762 = vmatpush1.bf16.msra.mxu0 0
        %763 = vmatprep.subr.bf16.mxu0 0
        %764 = vmatpush1.bf16.msra.mxu0 0
        %765 = vmatprep.subr.bf16.mxu0 0
        %766 = vmatpush1.bf16.msra.mxu0 0
        %767 = vmatprep.subr.bf16.mxu0 0
        %768 = vmatpush1.bf16.msra.mxu0 0
        %769 = vmatprep.subr.bf16.mxu0 0
        %770 = vmatpush1.bf16.msra.mxu0 0
        %771 = vmatprep.subr.bf16.mxu0 0
        %772 = vmatpush1.bf16.msra.mxu0 0
        %773 = vmatprep.subr.bf16.mxu0 0
        %774 = vmatpush1.bf16.msra.mxu0 %v755
        %775 = vmatprep.subr.bf16.mxu0 0
        %776 = vmatpush1.bf16.msra.mxu0 %v754
        %777 = vmatprep.subr.bf16.mxu0 0
        %778 = vmatpush2.bf16.msra.mxu0 0
        %779 = vmatprep.subr.bf16.mxu0 0
        %780 = vmatpush2.bf16.msra.mxu0 0
        %781 = vmatprep.subr.bf16.mxu0 0
        %782 = vmatpush2.bf16.msra.mxu0 0
        %783 = vmatprep.subr.bf16.mxu0 0
        %784 = vmatpush2.bf16.msra.mxu0 0
        %785 = vmatprep.subr.bf16.mxu0 0
        %786 = vmatpush2.bf16.msra.mxu0 0
        %787 = vmatprep.subr.bf16.mxu0 0
        %788 = vmatpush2.bf16.msra.mxu0 0
        %789 = vmatprep.subr.bf16.mxu0 0
        %790 = vmatpush2.bf16.msra.mxu0 0
        %791 = vmatprep.subr.bf16.mxu0 0
        %792 = vmatpush2.bf16.msra.mxu0 0
        %793 = vmatprep.mubr.bf16.mxu0 0
        %794 = vmatmul.mubr.bf16.gmra.mxu0 %v759
        %v795 = vpop.f32.mrf.mxu0
        %v796 = vadd.f32 %v744, %v795
        %v797 = vpop.f32.mrf.mxu0
        %v798 = vpop.f32.mrf.mxu0
        %v799 = vpop.f32.mrf.mxu0
        %800 = vdwg.mxu0
        %v801 = vmul.f32 %v796, 0.35355338
        %803 = vrot.lane.b32.xlu0 %v801, 120
        %v804 = vpop.permute.xlu0 %803
        %806 = vrot.lane.b32.xlu0 %v801, 112
        %v807 = vpop.permute.xlu0 %806
        %809 = vrot.lane.b32.xlu0 %v801, 104
        %v810 = vpop.permute.xlu0 %809
        %v812 = vpack.c.bf16 %v801, %v801
        %v813 = vpack.c.bf16 %v804, %v804
        %v814 = vpack.c.bf16 %v807, %v807
        %v815 = vpack.c.bf16 %v810, %v810
        %817 = vrot.lane.b32.xlu0 %v796, 120
        %v818 = vpop.permute.xlu0 %817
        %820 = vrot.lane.b32.xlu0 %v796, 112
        %v821 = vpop.permute.xlu0 %820
        %823 = vrot.lane.b32.xlu0 %v796, 104
        %v824 = vpop.permute.xlu0 %823
        %v826 = vpack.c.bf16 %v796, %v796
        %v827 = vpack.c.bf16 %v818, %v818
        %v828 = vpack.c.bf16 %v821, %v821
        %v829 = vpack.c.bf16 %v824, %v824
        %831 = vrot.lane.b32.xlu0 %v826, 96
        %v832 = vpop.permute.xlu0 %831
        %vm833 = vcmask 64512
        %v835 = vsel %vm833, %v812, 0
        %v838 = vsel %vm833, %v832, 0
        %840 = vmatprep.subr.bf16.mxu0 0
        %841 = vmatpush1.bf16.xpose.msra.mxu0 0
        %842 = vmatprep.subr.bf16.mxu0 0
        %843 = vmatpush1.bf16.xpose.msra.mxu0 0
        %844 = vmatprep.subr.bf16.mxu0 0
        %845 = vmatpush1.bf16.xpose.msra.mxu0 0
        %846 = vmatprep.subr.bf16.mxu0 0
        %847 = vmatpush1.bf16.xpose.msra.mxu0 0
        %848 = vmatprep.subr.bf16.mxu0 0
        %849 = vmatpush1.bf16.xpose.msra.mxu0 0
        %850 = vmatprep.subr.bf16.mxu0 0
        %851 = vmatpush1.bf16.xpose.msra.mxu0 0
        %852 = vmatprep.subr.bf16.mxu0 0
        %853 = vmatpush1.bf16.xpose.msra.mxu0 0
        %854 = vmatprep.subr.bf16.mxu0 0
        %855 = vmatpush1.bf16.xpose.msra.mxu0 %v838
        %856 = vmatprep.subr.bf16.mxu0 0
        %857 = vmatpush2.bf16.xpose.msra.mxu0 0
        %858 = vmatprep.subr.bf16.mxu0 0
        %859 = vmatpush2.bf16.xpose.msra.mxu0 0
        %860 = vmatprep.subr.bf16.mxu0 0
        %861 = vmatpush2.bf16.xpose.msra.mxu0 0
        %862 = vmatprep.subr.bf16.mxu0 0
        %863 = vmatpush2.bf16.xpose.msra.mxu0 0
        %864 = vmatprep.subr.bf16.mxu0 0
        %865 = vmatpush2.bf16.xpose.msra.mxu0 0
        %866 = vmatprep.subr.bf16.mxu0 0
        %867 = vmatpush2.bf16.xpose.msra.mxu0 0
        %868 = vmatprep.subr.bf16.mxu0 0
        %869 = vmatpush2.bf16.xpose.msra.mxu0 0
        %870 = vmatprep.subr.bf16.mxu0 0
        %871 = vmatpush2.bf16.xpose.msra.mxu0 0
        %872 = vmatprep.mubr.bf16.mxu0 0
        %873 = vmatmul.mubr.bf16.gmra.mxu0 %v835
        %v874 = vpop.f32.mrf.mxu0
        %v875 = vadd.f32 0.0, %v874
        %v876 = vpop.f32.mrf.mxu0
        %v877 = vpop.f32.mrf.mxu0
        %v878 = vpop.f32.mrf.mxu0
        %879 = vdwg.mxu0
        %881 = vrot.lane.b32.xlu0 %v827, 96
        %v882 = vpop.permute.xlu0 %881
        %v884 = vsel %vm833, %v813, 0
        %v887 = vsel %vm833, %v882, 0
        %889 = vmatprep.subr.bf16.mxu0 0
        %890 = vmatpush1.bf16.xpose.msra.mxu0 0
        %891 = vmatprep.subr.bf16.mxu0 0
        %892 = vmatpush1.bf16.xpose.msra.mxu0 0
        %893 = vmatprep.subr.bf16.mxu0 0
        %894 = vmatpush1.bf16.xpose.msra.mxu0 0
        %895 = vmatprep.subr.bf16.mxu0 0
        %896 = vmatpush1.bf16.xpose.msra.mxu0 0
        %897 = vmatprep.subr.bf16.mxu0 0
        %898 = vmatpush1.bf16.xpose.msra.mxu0 0
        %899 = vmatprep.subr.bf16.mxu0 0
        %900 = vmatpush1.bf16.xpose.msra.mxu0 0
        %901 = vmatprep.subr.bf16.mxu0 0
        %902 = vmatpush1.bf16.xpose.msra.mxu0 0
        %903 = vmatprep.subr.bf16.mxu0 0
        %904 = vmatpush1.bf16.xpose.msra.mxu0 %v887
        %905 = vmatprep.subr.bf16.mxu0 0
        %906 = vmatpush2.bf16.xpose.msra.mxu0 0
        %907 = vmatprep.subr.bf16.mxu0 0
        %908 = vmatpush2.bf16.xpose.msra.mxu0 0
        %909 = vmatprep.subr.bf16.mxu0 0
        %910 = vmatpush2.bf16.xpose.msra.mxu0 0
        %911 = vmatprep.subr.bf16.mxu0 0
        %912 = vmatpush2.bf16.xpose.msra.mxu0 0
        %913 = vmatprep.subr.bf16.mxu0 0
        %914 = vmatpush2.bf16.xpose.msra.mxu0 0
        %915 = vmatprep.subr.bf16.mxu0 0
        %916 = vmatpush2.bf16.xpose.msra.mxu0 0
        %917 = vmatprep.subr.bf16.mxu0 0
        %918 = vmatpush2.bf16.xpose.msra.mxu0 0
        %919 = vmatprep.subr.bf16.mxu0 0
        %920 = vmatpush2.bf16.xpose.msra.mxu0 0
        %921 = vmatprep.mubr.bf16.mxu0 0
        %922 = vmatmul.mubr.bf16.gmra.mxu0 %v884
        %v923 = vpop.f32.mrf.mxu0
        %v924 = vadd.f32 0.0, %v923
        %v925 = vpop.f32.mrf.mxu0
        %v926 = vpop.f32.mrf.mxu0
        %v927 = vpop.f32.mrf.mxu0
        %928 = vdwg.mxu0
        %930 = vrot.lane.b32.xlu0 %v828, 96
        %v931 = vpop.permute.xlu0 %930
        %v933 = vsel %vm833, %v814, 0
        %v936 = vsel %vm833, %v931, 0
        %938 = vmatprep.subr.bf16.mxu0 0
        %939 = vmatpush1.bf16.xpose.msra.mxu0 0
        %940 = vmatprep.subr.bf16.mxu0 0
        %941 = vmatpush1.bf16.xpose.msra.mxu0 0
        %942 = vmatprep.subr.bf16.mxu0 0
        %943 = vmatpush1.bf16.xpose.msra.mxu0 0
        %944 = vmatprep.subr.bf16.mxu0 0
        %945 = vmatpush1.bf16.xpose.msra.mxu0 0
        %946 = vmatprep.subr.bf16.mxu0 0
        %947 = vmatpush1.bf16.xpose.msra.mxu0 0
        %948 = vmatprep.subr.bf16.mxu0 0
        %949 = vmatpush1.bf16.xpose.msra.mxu0 0
        %950 = vmatprep.subr.bf16.mxu0 0
        %951 = vmatpush1.bf16.xpose.msra.mxu0 0
        %952 = vmatprep.subr.bf16.mxu0 0
        %953 = vmatpush1.bf16.xpose.msra.mxu0 %v936
        %954 = vmatprep.subr.bf16.mxu0 0
        %955 = vmatpush2.bf16.xpose.msra.mxu0 0
        %956 = vmatprep.subr.bf16.mxu0 0
        %957 = vmatpush2.bf16.xpose.msra.mxu0 0
        %958 = vmatprep.subr.bf16.mxu0 0
        %959 = vmatpush2.bf16.xpose.msra.mxu0 0
        %960 = vmatprep.subr.bf16.mxu0 0
        %961 = vmatpush2.bf16.xpose.msra.mxu0 0
        %962 = vmatprep.subr.bf16.mxu0 0
        %963 = vmatpush2.bf16.xpose.msra.mxu0 0
        %964 = vmatprep.subr.bf16.mxu0 0
        %965 = vmatpush2.bf16.xpose.msra.mxu0 0
        %966 = vmatprep.subr.bf16.mxu0 0
        %967 = vmatpush2.bf16.xpose.msra.mxu0 0
        %968 = vmatprep.subr.bf16.mxu0 0
        %969 = vmatpush2.bf16.xpose.msra.mxu0 0
        %970 = vmatprep.mubr.bf16.mxu0 0
        %971 = vmatmul.mubr.bf16.gmra.mxu0 %v933
        %v972 = vpop.f32.mrf.mxu0
        %v973 = vadd.f32 0.0, %v972
        %v974 = vpop.f32.mrf.mxu0
        %v975 = vpop.f32.mrf.mxu0
        %v976 = vpop.f32.mrf.mxu0
        %977 = vdwg.mxu0
        %979 = vrot.lane.b32.xlu0 %v829, 96
        %v980 = vpop.permute.xlu0 %979
        %v982 = vsel %vm833, %v815, 0
        %v985 = vsel %vm833, %v980, 0
        %987 = vmatprep.subr.bf16.mxu0 0
        %988 = vmatpush1.bf16.xpose.msra.mxu0 0
        %989 = vmatprep.subr.bf16.mxu0 0
        %990 = vmatpush1.bf16.xpose.msra.mxu0 0
        %991 = vmatprep.subr.bf16.mxu0 0
        %992 = vmatpush1.bf16.xpose.msra.mxu0 0
        %993 = vmatprep.subr.bf16.mxu0 0
        %994 = vmatpush1.bf16.xpose.msra.mxu0 0
        %995 = vmatprep.subr.bf16.mxu0 0
        %996 = vmatpush1.bf16.xpose.msra.mxu0 0
        %997 = vmatprep.subr.bf16.mxu0 0
        %998 = vmatpush1.bf16.xpose.msra.mxu0 0
        %999 = vmatprep.subr.bf16.mxu0 0
        %1000 = vmatpush1.bf16.xpose.msra.mxu0 0
        %1001 = vmatprep.subr.bf16.mxu0 0
        %1002 = vmatpush1.bf16.xpose.msra.mxu0 %v985
        %1003 = vmatprep.subr.bf16.mxu0 0
        %1004 = vmatpush2.bf16.xpose.msra.mxu0 0
        %1005 = vmatprep.subr.bf16.mxu0 0
        %1006 = vmatpush2.bf16.xpose.msra.mxu0 0
        %1007 = vmatprep.subr.bf16.mxu0 0
        %1008 = vmatpush2.bf16.xpose.msra.mxu0 0
        %1009 = vmatprep.subr.bf16.mxu0 0
        %1010 = vmatpush2.bf16.xpose.msra.mxu0 0
        %1011 = vmatprep.subr.bf16.mxu0 0
        %1012 = vmatpush2.bf16.xpose.msra.mxu0 0
        %1013 = vmatprep.subr.bf16.mxu0 0
        %1014 = vmatpush2.bf16.xpose.msra.mxu0 0
        %1015 = vmatprep.subr.bf16.mxu0 0
        %1016 = vmatpush2.bf16.xpose.msra.mxu0 0
        %1017 = vmatprep.subr.bf16.mxu0 0
        %1018 = vmatpush2.bf16.xpose.msra.mxu0 0
        %1019 = vmatprep.mubr.bf16.mxu0 0
        %1020 = vmatmul.mubr.bf16.gmra.mxu0 %v982
        %v1021 = vpop.f32.mrf.mxu0
        %v1022 = vadd.f32 0.0, %v1021
        %v1023 = vpop.f32.mrf.mxu0
        %v1024 = vpop.f32.mrf.mxu0
        %v1025 = vpop.f32.mrf.mxu0
        %1026 = vdwg.mxu0
        %v1027 = vlaneseq
        %v1028 = vshrl.u32 %v1027, 7
        %v1029 = vlaneseq
        %v1030 = vand.u32 %v1029, 127
        %vm1031 = vcmp.ge.s32.totalorder %v1028, %v1030
        %v1032 = vsel %vm1031, 1, 0
        %vm1033 = vcmp.eq.s32.totalorder %v1032, 1
        %v1034 = vsel %vm1033, %v875, -1e+30
        %v1035 = vsel %vm1033, %v924, -1e+30
        %v1036 = vsel %vm1033, %v973, -1e+30
        %v1037 = vsel %vm1033, %v1022, -1e+30
        %v1038 = vsel %vm833, %v1034, -inf
        %1039 = vmax.xlane.f32.xlu0 %v1038
        %v1040 = vpop.xlane.xlu0 %1039
        %v1041 = vsel %vm833, %v1035, -inf
        %1042 = vmax.xlane.f32.xlu0 %v1041
        %v1043 = vpop.xlane.xlu0 %1042
        %v1044 = vsel %vm833, %v1036, -inf
        %1045 = vmax.xlane.f32.xlu0 %v1044
        %v1046 = vpop.xlane.xlu0 %1045
        %v1047 = vsel %vm833, %v1037, -inf
        %1048 = vmax.xlane.f32.xlu0 %v1047
        %v1049 = vpop.xlane.xlu0 %1048
        %v1050 = vmax.f32 %v1040, -1e+30
        %v1051 = vmax.f32 %v1043, -1e+30
        %v1052 = vmax.f32 %v1046, -1e+30
        %v1053 = vmax.f32 %v1049, -1e+30
        %v1054 = vsub.f32 -1e+30, %v1050
        %v1055 = vsub.f32 -1e+30, %v1051
        %v1056 = vsub.f32 -1e+30, %v1052
        %v1057 = vsub.f32 -1e+30, %v1053
        %v1058 = vmul.f32 %v1054, 1.442695
        %v1059 = vpow.pop %v1058
        %v1060 = vmul.f32 %v1055, 1.442695
        %v1061 = vpow.pop %v1060
        %v1062 = vmul.f32 %v1056, 1.442695
        %v1063 = vpow.pop %v1062
        %v1064 = vmul.f32 %v1057, 1.442695
        %v1065 = vpow.pop %v1064
        %v1066 = vsub.f32 %v1034, %v1050
        %v1067 = vsub.f32 %v1035, %v1051
        %v1068 = vsub.f32 %v1036, %v1052
        %v1069 = vsub.f32 %v1037, %v1053
        %v1070 = vmul.f32 %v1066, 1.442695
        %v1071 = vpow.pop %v1070
        %v1072 = vmul.f32 %v1067, 1.442695
        %v1073 = vpow.pop %v1072
        %v1074 = vmul.f32 %v1068, 1.442695
        %v1075 = vpow.pop %v1074
        %v1076 = vmul.f32 %v1069, 1.442695
        %v1077 = vpow.pop %v1076
        %v1078 = vmul.f32 %v1059, 0.0
        %v1079 = vmul.f32 %v1061, 0.0
        %v1080 = vmul.f32 %v1063, 0.0
        %v1081 = vmul.f32 %v1065, 0.0
        %v1082 = vsel %vm833, %v1071, 0.0
        %1083 = vadd.xlane.f32.xlu0 %v1082
        %v1084 = vpop.xlane.xlu0 %1083
        %v1085 = vsel %vm833, %v1073, 0.0
        %1086 = vadd.xlane.f32.xlu0 %v1085
        %v1087 = vpop.xlane.xlu0 %1086
        %v1088 = vsel %vm833, %v1075, 0.0
        %1089 = vadd.xlane.f32.xlu0 %v1088
        %v1090 = vpop.xlane.xlu0 %1089
        %v1091 = vsel %vm833, %v1077, 0.0
        %1092 = vadd.xlane.f32.xlu0 %v1091
        %v1093 = vpop.xlane.xlu0 %1092
        %v1094 = vadd.f32 %v1078, %v1084
        %v1095 = vadd.f32 %v1079, %v1087
        %v1096 = vadd.f32 %v1080, %v1090
        %v1097 = vadd.f32 %v1081, %v1093
        %v1098 = vpack.c.bf16 %v1071, %v1071
        %v1099 = vpack.c.bf16 %v1073, %v1073
        %v1100 = vpack.c.bf16 %v1075, %v1075
        %v1101 = vpack.c.bf16 %v1077, %v1077
        %1102 = vrot.lane.b32.xlu0 %v826, 64
        %v1103 = vpop.permute.xlu0 %1102
        %v1105 = vsel %vm833, %v1098, 0
        %vm1107 = vcmask 1043456
        %v1109 = vsel %vm1107, %v1103, 0
        %1111 = vmatprep.subr.bf16.mxu0 0
        %1112 = vmatpush1.bf16.msra.mxu0 0
        %1113 = vmatprep.subr.bf16.mxu0 0
        %1114 = vmatpush1.bf16.msra.mxu0 0
        %1115 = vmatprep.subr.bf16.mxu0 0
        %1116 = vmatpush1.bf16.msra.mxu0 0
        %1117 = vmatprep.subr.bf16.mxu0 0
        %1118 = vmatpush1.bf16.msra.mxu0 0
        %1119 = vmatprep.subr.bf16.mxu0 0
        %1120 = vmatpush1.bf16.msra.mxu0 0
        %1121 = vmatprep.subr.bf16.mxu0 0
        %1122 = vmatpush1.bf16.msra.mxu0 0
        %1123 = vmatprep.subr.bf16.mxu0 0
        %1124 = vmatpush1.bf16.msra.mxu0 0
        %1125 = vmatprep.subr.bf16.mxu0 0
        %1126 = vmatpush1.bf16.msra.mxu0 %v1109
        %1127 = vmatprep.subr.bf16.mxu0 0
        %1128 = vmatpush2.bf16.msra.mxu0 0
        %1129 = vmatprep.subr.bf16.mxu0 0
        %1130 = vmatpush2.bf16.msra.mxu0 0
        %1131 = vmatprep.subr.bf16.mxu0 0
        %1132 = vmatpush2.bf16.msra.mxu0 0
        %1133 = vmatprep.subr.bf16.mxu0 0
        %1134 = vmatpush2.bf16.msra.mxu0 0
        %1135 = vmatprep.subr.bf16.mxu0 0
        %1136 = vmatpush2.bf16.msra.mxu0 0
        %1137 = vmatprep.subr.bf16.mxu0 0
        %1138 = vmatpush2.bf16.msra.mxu0 0
        %1139 = vmatprep.subr.bf16.mxu0 0
        %1140 = vmatpush2.bf16.msra.mxu0 0
        %1141 = vmatprep.subr.bf16.mxu0 0
        %1142 = vmatpush2.bf16.msra.mxu0 0
        %1143 = vmatprep.mubr.bf16.mxu0 0
        %1144 = vmatmul.mubr.bf16.gmra.mxu0 %v1105
        %v1145 = vpop.f32.mrf.mxu0
        %v1146 = vadd.f32 0.0, %v1145
        %v1147 = vpop.f32.mrf.mxu0
        %v1148 = vpop.f32.mrf.mxu0
        %v1149 = vpop.f32.mrf.mxu0
        %1150 = vdwg.mxu0
        %1151 = vrot.lane.b32.xlu0 %v827, 64
        %v1152 = vpop.permute.xlu0 %1151
        %v1154 = vsel %vm833, %v1099, 0
        %v1157 = vsel %vm1107, %v1152, 0
        %1159 = vmatprep.subr.bf16.mxu0 0
        %1160 = vmatpush1.bf16.msra.mxu0 0
        %1161 = vmatprep.subr.bf16.mxu0 0
        %1162 = vmatpush1.bf16.msra.mxu0 0
        %1163 = vmatprep.subr.bf16.mxu0 0
        %1164 = vmatpush1.bf16.msra.mxu0 0
        %1165 = vmatprep.subr.bf16.mxu0 0
        %1166 = vmatpush1.bf16.msra.mxu0 0
        %1167 = vmatprep.subr.bf16.mxu0 0
        %1168 = vmatpush1.bf16.msra.mxu0 0
        %1169 = vmatprep.subr.bf16.mxu0 0
        %1170 = vmatpush1.bf16.msra.mxu0 0
        %1171 = vmatprep.subr.bf16.mxu0 0
        %1172 = vmatpush1.bf16.msra.mxu0 0
        %1173 = vmatprep.subr.bf16.mxu0 0
        %1174 = vmatpush1.bf16.msra.mxu0 %v1157
        %1175 = vmatprep.subr.bf16.mxu0 0
        %1176 = vmatpush2.bf16.msra.mxu0 0
        %1177 = vmatprep.subr.bf16.mxu0 0
        %1178 = vmatpush2.bf16.msra.mxu0 0
        %1179 = vmatprep.subr.bf16.mxu0 0
        %1180 = vmatpush2.bf16.msra.mxu0 0
        %1181 = vmatprep.subr.bf16.mxu0 0
        %1182 = vmatpush2.bf16.msra.mxu0 0
        %1183 = vmatprep.subr.bf16.mxu0 0
        %1184 = vmatpush2.bf16.msra.mxu0 0
        %1185 = vmatprep.subr.bf16.mxu0 0
        %1186 = vmatpush2.bf16.msra.mxu0 0
        %1187 = vmatprep.subr.bf16.mxu0 0
        %1188 = vmatpush2.bf16.msra.mxu0 0
        %1189 = vmatprep.subr.bf16.mxu0 0
        %1190 = vmatpush2.bf16.msra.mxu0 0
        %1191 = vmatprep.mubr.bf16.mxu0 0
        %1192 = vmatmul.mubr.bf16.gmra.mxu0 %v1154
        %v1193 = vpop.f32.mrf.mxu0
        %v1194 = vadd.f32 0.0, %v1193
        %v1195 = vpop.f32.mrf.mxu0
        %v1196 = vpop.f32.mrf.mxu0
        %v1197 = vpop.f32.mrf.mxu0
        %1198 = vdwg.mxu0
        %1199 = vrot.lane.b32.xlu0 %v828, 64
        %v1200 = vpop.permute.xlu0 %1199
        %v1202 = vsel %vm833, %v1100, 0
        %v1205 = vsel %vm1107, %v1200, 0
        %1207 = vmatprep.subr.bf16.mxu0 0
        %1208 = vmatpush1.bf16.msra.mxu0 0
        %1209 = vmatprep.subr.bf16.mxu0 0
        %1210 = vmatpush1.bf16.msra.mxu0 0
        %1211 = vmatprep.subr.bf16.mxu0 0
        %1212 = vmatpush1.bf16.msra.mxu0 0
        %1213 = vmatprep.subr.bf16.mxu0 0
        %1214 = vmatpush1.bf16.msra.mxu0 0
        %1215 = vmatprep.subr.bf16.mxu0 0
        %1216 = vmatpush1.bf16.msra.mxu0 0
        %1217 = vmatprep.subr.bf16.mxu0 0
        %1218 = vmatpush1.bf16.msra.mxu0 0
        %1219 = vmatprep.subr.bf16.mxu0 0
        %1220 = vmatpush1.bf16.msra.mxu0 0
        %1221 = vmatprep.subr.bf16.mxu0 0
        %1222 = vmatpush1.bf16.msra.mxu0 %v1205
        %1223 = vmatprep.subr.bf16.mxu0 0
        %1224 = vmatpush2.bf16.msra.mxu0 0
        %1225 = vmatprep.subr.bf16.mxu0 0
        %1226 = vmatpush2.bf16.msra.mxu0 0
        %1227 = vmatprep.subr.bf16.mxu0 0
        %1228 = vmatpush2.bf16.msra.mxu0 0
        %1229 = vmatprep.subr.bf16.mxu0 0
        %1230 = vmatpush2.bf16.msra.mxu0 0
        %1231 = vmatprep.subr.bf16.mxu0 0
        %1232 = vmatpush2.bf16.msra.mxu0 0
        %1233 = vmatprep.subr.bf16.mxu0 0
        %1234 = vmatpush2.bf16.msra.mxu0 0
        %1235 = vmatprep.subr.bf16.mxu0 0
        %1236 = vmatpush2.bf16.msra.mxu0 0
        %1237 = vmatprep.subr.bf16.mxu0 0
        %1238 = vmatpush2.bf16.msra.mxu0 0
        %1239 = vmatprep.mubr.bf16.mxu0 0
        %1240 = vmatmul.mubr.bf16.gmra.mxu0 %v1202
        %v1241 = vpop.f32.mrf.mxu0
        %v1242 = vadd.f32 0.0, %v1241
        %v1243 = vpop.f32.mrf.mxu0
        %v1244 = vpop.f32.mrf.mxu0
        %v1245 = vpop.f32.mrf.mxu0
        %1246 = vdwg.mxu0
        %1247 = vrot.lane.b32.xlu0 %v829, 64
        %v1248 = vpop.permute.xlu0 %1247
        %v1250 = vsel %vm833, %v1101, 0
        %v1253 = vsel %vm1107, %v1248, 0
        %1255 = vmatprep.subr.bf16.mxu0 0
        %1256 = vmatpush1.bf16.msra.mxu0 0
        %1257 = vmatprep.subr.bf16.mxu0 0
        %1258 = vmatpush1.bf16.msra.mxu0 0
        %1259 = vmatprep.subr.bf16.mxu0 0
        %1260 = vmatpush1.bf16.msra.mxu0 0
        %1261 = vmatprep.subr.bf16.mxu0 0
        %1262 = vmatpush1.bf16.msra.mxu0 0
        %1263 = vmatprep.subr.bf16.mxu0 0
        %1264 = vmatpush1.bf16.msra.mxu0 0
        %1265 = vmatprep.subr.bf16.mxu0 0
        %1266 = vmatpush1.bf16.msra.mxu0 0
        %1267 = vmatprep.subr.bf16.mxu0 0
        %1268 = vmatpush1.bf16.msra.mxu0 0
        %1269 = vmatprep.subr.bf16.mxu0 0
        %1270 = vmatpush1.bf16.msra.mxu0 %v1253
        %1271 = vmatprep.subr.bf16.mxu0 0
        %1272 = vmatpush2.bf16.msra.mxu0 0
        %1273 = vmatprep.subr.bf16.mxu0 0
        %1274 = vmatpush2.bf16.msra.mxu0 0
        %1275 = vmatprep.subr.bf16.mxu0 0
        %1276 = vmatpush2.bf16.msra.mxu0 0
        %1277 = vmatprep.subr.bf16.mxu0 0
        %1278 = vmatpush2.bf16.msra.mxu0 0
        %1279 = vmatprep.subr.bf16.mxu0 0
        %1280 = vmatpush2.bf16.msra.mxu0 0
        %1281 = vmatprep.subr.bf16.mxu0 0
        %1282 = vmatpush2.bf16.msra.mxu0 0
        %1283 = vmatprep.subr.bf16.mxu0 0
        %1284 = vmatpush2.bf16.msra.mxu0 0
        %1285 = vmatprep.subr.bf16.mxu0 0
        %1286 = vmatpush2.bf16.msra.mxu0 0
        %1287 = vmatprep.mubr.bf16.mxu0 0
        %1288 = vmatmul.mubr.bf16.gmra.mxu0 %v1250
        %v1289 = vpop.f32.mrf.mxu0
        %v1290 = vadd.f32 0.0, %v1289
        %v1291 = vpop.f32.mrf.mxu0
        %v1292 = vpop.f32.mrf.mxu0
        %v1293 = vpop.f32.mrf.mxu0
        %1294 = vdwg.mxu0
        %v1295 = vadd.f32 %v1078, %v1146
        %v1296 = vadd.f32 %v1079, %v1194
        %v1297 = vadd.f32 %v1080, %v1242
        %v1298 = vadd.f32 %v1081, %v1290
        %v1299 = vrcp.pop %v1094
        %v1300 = vrcp.pop %v1095
        %v1301 = vrcp.pop %v1096
        %v1302 = vrcp.pop %v1097
        %v1303 = vmul.f32 %v1295, %v1299
        %v1304 = vmul.f32 %v1296, %v1300
        %v1305 = vmul.f32 %v1297, %v1301
        %v1306 = vmul.f32 %v1298, %v1302
        %v1307 = vpack.c.bf16 %v1303, %v1303
        %v1308 = vpack.c.bf16 %v1304, %v1304
        %v1309 = vpack.c.bf16 %v1305, %v1305
        %v1310 = vpack.c.bf16 %v1306, %v1306
        %1312 = vrot.lane.b32.xlu0 %v1308, 8
        %v1313 = vpop.permute.xlu0 %1312
        %1315 = vrot.lane.b32.xlu0 %v1309, 16
        %v1316 = vpop.permute.xlu0 %1315
        %1318 = vrot.lane.b32.xlu0 %v1310, 24
        %v1319 = vpop.permute.xlu0 %1318
        %v1322 = vsel %vm833, %v1307, %v1313
        %vm1323 = vcmask 130048
        %v1325 = vsel %vm1323, %v1322, %v1316
        %vm1326 = vcmask 195584
        %v1328 = vsel %vm1326, %v1325, %v1319
        %v1329 = vld [vmem:[%s668] sm:$0xf]
        %v1330 = vld [vmem:[%s668 + $0x4] sm:$0xf]
        %v1331 = vld [vmem:[%s668 + $0x8] sm:$0xf]
        %v1332 = vld [vmem:[%s668 + $0xc] sm:$0xf]
        %v1333 = vld [vmem:[%s671] sm:$0x1]
        %v1335 = vlaneseq
        %v1336 = vshrl.u32 %v1335, 7
        %v1337 = vsub.s32 0, %v1336
        %v1338 = vrot.slane %v1333, %v1337
        %v1344 = vunpack.c.l.b16 %v1329
        %v1345 = vunpack.c.l.b16 %v1330
        %v1346 = vunpack.c.l.b16 %v1331
        %v1347 = vunpack.c.l.b16 %v1332
        %v1348 = vpack.c.b16 %v1345, %v1344
        %v1349 = vpack.c.b16 %v1347, %v1346
        %v1352 = vsel %vm705, %v1328, 0
        %1354 = vmatprep.subr.bf16.mxu0 0
        %1355 = vmatpush1.bf16.msra.mxu0 0
        %1356 = vmatprep.subr.bf16.mxu0 0
        %1357 = vmatpush1.bf16.msra.mxu0 0
        %1358 = vmatprep.subr.bf16.mxu0 0
        %1359 = vmatpush1.bf16.msra.mxu0 0
        %1360 = vmatprep.subr.bf16.mxu0 0
        %1361 = vmatpush1.bf16.msra.mxu0 0
        %1362 = vmatprep.subr.bf16.mxu0 0
        %1363 = vmatpush1.bf16.msra.mxu0 0
        %1364 = vmatprep.subr.bf16.mxu0 0
        %1365 = vmatpush1.bf16.msra.mxu0 0
        %1366 = vmatprep.subr.bf16.mxu0 0
        %1367 = vmatpush1.bf16.msra.mxu0 %v1349
        %1368 = vmatprep.subr.bf16.mxu0 0
        %1369 = vmatpush1.bf16.msra.mxu0 %v1348
        %1370 = vmatprep.subr.bf16.mxu0 0
        %1371 = vmatpush2.bf16.msra.mxu0 0
        %1372 = vmatprep.subr.bf16.mxu0 0
        %1373 = vmatpush2.bf16.msra.mxu0 0
        %1374 = vmatprep.subr.bf16.mxu0 0
        %1375 = vmatpush2.bf16.msra.mxu0 0
        %1376 = vmatprep.subr.bf16.mxu0 0
        %1377 = vmatpush2.bf16.msra.mxu0 0
        %1378 = vmatprep.subr.bf16.mxu0 0
        %1379 = vmatpush2.bf16.msra.mxu0 0
        %1380 = vmatprep.subr.bf16.mxu0 0
        %1381 = vmatpush2.bf16.msra.mxu0 0
        %1382 = vmatprep.subr.bf16.mxu0 0
        %1383 = vmatpush2.bf16.msra.mxu0 0
        %1384 = vmatprep.subr.bf16.mxu0 0
        %1385 = vmatpush2.bf16.msra.mxu0 0
        %1386 = vmatprep.mubr.bf16.mxu0 0
        %1387 = vmatmul.mubr.bf16.gmra.mxu0 %v1352
        %v1388 = vpop.f32.mrf.mxu0
        %v1389 = vadd.f32 %v1338, %v1388
        %v1390 = vpop.f32.mrf.mxu0
        %v1391 = vpop.f32.mrf.mxu0
        %v1392 = vpop.f32.mrf.mxu0
        %1393 = vdwg.mxu0
        %v1394 = vadd.f32 %v702, %v1389
        %v1395 = vld [vmem:[%s674] sm:$0x1]
        %v1396 = vld [vmem:[%s677] sm:$0x1]
        %v1397 = vsel %vm705, %v1394, 0.0
        %1398 = vadd.xlane.f32.xlu0 %v1397
        %v1399 = vpop.xlane.xlu0 %1398
        %v1400 = vmul.f32 %v1399, %v709
        %v1401 = vsub.f32 %v1394, %v1400
        %v1402 = vmul.f32 %v1401, %v1401
        %v1403 = vsel %vm705, %v1402, 0.0
        %1404 = vadd.xlane.f32.xlu0 %v1403
        %v1405 = vpop.xlane.xlu0 %1404
        %v1406 = vmul.f32 %v1405, %v709
        %v1407 = vadd.f32 %v1406, 1e-05
        %v1408 = vrsqrt.pop %v1407
        %v1409 = vmul.f32 %v1401, %v1408
        %v1411 = vlaneseq
        %v1412 = vshrl.u32 %v1411, 7
        %v1413 = vsub.s32 0, %v1412
        %v1414 = vrot.slane %v1395, %v1413
        %v1416 = vmul.f32 %v1409, %v1414
        %v1418 = vlaneseq
        %v1419 = vshrl.u32 %v1418, 7
        %v1420 = vsub.s32 0, %v1419
        %v1421 = vrot.slane %v1396, %v1420
        %v1423 = vadd.f32 %v1416, %v1421
        %v1424 = vpack.c.bf16 %v1423, %v1423
        %v1425 = vld [vmem:[%s682] sm:$0xf]
        %v1426 = vld [vmem:[%s682 + $0x4] sm:$0xf]
        %v1427 = vld [vmem:[%s682 + $0x8] sm:$0xf]
        %v1428 = vld [vmem:[%s682 + $0xc] sm:$0xf]
        %v1429 = vld [vmem:[%s685] sm:$0x1]
        %v1431 = vlaneseq
        %v1432 = vshrl.u32 %v1431, 7
        %v1433 = vsub.s32 0, %v1432
        %v1434 = vrot.slane %v1429, %v1433
        %v1440 = vunpack.c.l.b16 %v1425
        %v1441 = vunpack.c.l.b16 %v1426
        %v1442 = vunpack.c.l.b16 %v1427
        %v1443 = vunpack.c.l.b16 %v1428
        %v1444 = vpack.c.b16 %v1441, %v1440
        %v1445 = vpack.c.b16 %v1443, %v1442
        %v1449 = vsel %vm705, %v1424, 0
        %1451 = vmatprep.subr.bf16.mxu0 0
        %1452 = vmatpush1.bf16.msra.mxu0 0
        %1453 = vmatprep.subr.bf16.mxu0 0
        %1454 = vmatpush1.bf16.msra.mxu0 0
        %1455 = vmatprep.subr.bf16.mxu0 0
        %1456 = vmatpush1.bf16.msra.mxu0 0
        %1457 = vmatprep.subr.bf16.mxu0 0
        %1458 = vmatpush1.bf16.msra.mxu0 0
        %1459 = vmatprep.subr.bf16.mxu0 0
        %1460 = vmatpush1.bf16.msra.mxu0 0
        %1461 = vmatprep.subr.bf16.mxu0 0
        %1462 = vmatpush1.bf16.msra.mxu0 0
        %1463 = vmatprep.subr.bf16.mxu0 0
        %1464 = vmatpush1.bf16.msra.mxu0 %v1445
        %1465 = vmatprep.subr.bf16.mxu0 0
        %1466 = vmatpush1.bf16.msra.mxu0 %v1444
        %1467 = vmatprep.subr.bf16.mxu0 0
        %1468 = vmatpush2.bf16.msra.mxu0 0
        %1469 = vmatprep.subr.bf16.mxu0 0
        %1470 = vmatpush2.bf16.msra.mxu0 0
        %1471 = vmatprep.subr.bf16.mxu0 0
        %1472 = vmatpush2.bf16.msra.mxu0 0
        %1473 = vmatprep.subr.bf16.mxu0 0
        %1474 = vmatpush2.bf16.msra.mxu0 0
        %1475 = vmatprep.subr.bf16.mxu0 0
        %1476 = vmatpush2.bf16.msra.mxu0 0
        %1477 = vmatprep.subr.bf16.mxu0 0
        %1478 = vmatpush2.bf16.msra.mxu0 0
        %1479 = vmatprep.subr.bf16.mxu0 0
        %1480 = vmatpush2.bf16.msra.mxu0 0
        %1481 = vmatprep.subr.bf16.mxu0 0
        %1482 = vmatpush2.bf16.msra.mxu0 0
        %1483 = vmatprep.mubr.bf16.mxu0 0
        %1484 = vmatmul.mubr.bf16.gmra.mxu0 %v1449
        %v1485 = vpop.f32.mrf.mxu0
        %v1486 = vadd.f32 %v1434, %v1485
        %v1487 = vpop.f32.mrf.mxu0
        %v1488 = vpop.f32.mrf.mxu0
        %v1489 = vpop.f32.mrf.mxu0
        %1490 = vdwg.mxu0
        %v1491 = vmul.f32 %v1486, 0.5
        %v1492 = vmul.f32 %v1486, 0.044715
        %v1493 = vmul.f32 %v1492, %v1486
        %v1494 = vmul.f32 %v1493, %v1486
        %v1495 = vadd.f32 %v1486, %v1494
        %v1496 = vmul.f32 %v1495, 0.7978846
        %v1497 = vtanh.pop %v1496
        %v1498 = vadd.f32 %v1497, 1.0
        %v1499 = vmul.f32 %v1491, %v1498
        %v1500 = vpack.c.bf16 %v1499, %v1499
        %v1501 = vld [vmem:[%s690] sm:$0xf]
        %v1502 = vld [vmem:[%s690 + $0x4] sm:$0xf]
        %v1503 = vld [vmem:[%s690 + $0x8] sm:$0xf]
        %v1504 = vld [vmem:[%s690 + $0xc] sm:$0xf]
        %v1505 = vld [vmem:[%s690 + $0x10] sm:$0xf]
        %v1506 = vld [vmem:[%s690 + $0x14] sm:$0xf]
        %v1507 = vld [vmem:[%s690 + $0x18] sm:$0xf]
        %v1508 = vld [vmem:[%s690 + $0x1c] sm:$0xf]
        %v1509 = vld [vmem:[%s690 + $0x20] sm:$0xf]
        %v1510 = vld [vmem:[%s690 + $0x24] sm:$0xf]
        %v1511 = vld [vmem:[%s690 + $0x28] sm:$0xf]
        %v1512 = vld [vmem:[%s690 + $0x2c] sm:$0xf]
        %v1513 = vld [vmem:[%s690 + $0x30] sm:$0xf]
        %v1514 = vld [vmem:[%s690 + $0x34] sm:$0xf]
        %v1515 = vld [vmem:[%s690 + $0x38] sm:$0xf]
        %v1516 = vld [vmem:[%s690 + $0x3c] sm:$0xf]
        %v1517 = vld [vmem:[%s693] sm:$0x1]
        %v1519 = vlaneseq
        %v1520 = vshrl.u32 %v1519, 7
        %v1521 = vsub.s32 0, %v1520
        %v1522 = vrot.slane %v1517, %v1521
        %v1540 = vunpack.c.l.b16 %v1501
        %v1541 = vunpack.c.l.b16 %v1502
        %v1542 = vunpack.c.l.b16 %v1503
        %v1543 = vunpack.c.l.b16 %v1504
        %v1544 = vunpack.c.l.b16 %v1505
        %v1545 = vunpack.c.l.b16 %v1506
        %v1546 = vunpack.c.l.b16 %v1507
        %v1547 = vunpack.c.l.b16 %v1508
        %v1548 = vunpack.c.l.b16 %v1509
        %v1549 = vunpack.c.l.b16 %v1510
        %v1550 = vunpack.c.l.b16 %v1511
        %v1551 = vunpack.c.l.b16 %v1512
        %v1552 = vunpack.c.l.b16 %v1513
        %v1553 = vunpack.c.l.b16 %v1514
        %v1554 = vunpack.c.l.b16 %v1515
        %v1555 = vunpack.c.l.b16 %v1516
        %v1556 = vpack.c.b16 %v1541, %v1540
        %v1557 = vpack.c.b16 %v1543, %v1542
        %v1558 = vpack.c.b16 %v1545, %v1544
        %v1559 = vpack.c.b16 %v1547, %v1546
        %v1560 = vpack.c.b16 %v1549, %v1548
        %v1561 = vpack.c.b16 %v1551, %v1550
        %v1562 = vpack.c.b16 %v1553, %v1552
        %v1563 = vpack.c.b16 %v1555, %v1554
        %1572 = vmatprep.subr.bf16.mxu0 0
        %1573 = vmatpush1.bf16.msra.mxu0 %v1563
        %1574 = vmatprep.subr.bf16.mxu0 0
        %1575 = vmatpush1.bf16.msra.mxu0 %v1562
        %1576 = vmatprep.subr.bf16.mxu0 0
        %1577 = vmatpush1.bf16.msra.mxu0 %v1561
        %1578 = vmatprep.subr.bf16.mxu0 0
        %1579 = vmatpush1.bf16.msra.mxu0 %v1560
        %1580 = vmatprep.subr.bf16.mxu0 0
        %1581 = vmatpush1.bf16.msra.mxu0 %v1559
        %1582 = vmatprep.subr.bf16.mxu0 0
        %1583 = vmatpush1.bf16.msra.mxu0 %v1558
        %1584 = vmatprep.subr.bf16.mxu0 0
        %1585 = vmatpush1.bf16.msra.mxu0 %v1557
        %1586 = vmatprep.subr.bf16.mxu0 0
        %1587 = vmatpush1.bf16.msra.mxu0 %v1556
        %1588 = vmatprep.subr.bf16.mxu0 0
        %1589 = vmatpush2.bf16.msra.mxu0 0
        %1590 = vmatprep.subr.bf16.mxu0 0
        %1591 = vmatpush2.bf16.msra.mxu0 0
        %1592 = vmatprep.subr.bf16.mxu0 0
        %1593 = vmatpush2.bf16.msra.mxu0 0
        %1594 = vmatprep.subr.bf16.mxu0 0
        %1595 = vmatpush2.bf16.msra.mxu0 0
        %1596 = vmatprep.subr.bf16.mxu0 0
        %1597 = vmatpush2.bf16.msra.mxu0 0
        %1598 = vmatprep.subr.bf16.mxu0 0
        %1599 = vmatpush2.bf16.msra.mxu0 0
        %1600 = vmatprep.subr.bf16.mxu0 0
        %1601 = vmatpush2.bf16.msra.mxu0 0
        %1602 = vmatprep.subr.bf16.mxu0 0
        %1603 = vmatpush2.bf16.msra.mxu0 0
        %1604 = vmatprep.mubr.bf16.mxu0 0
        %1605 = vmatmul.mubr.bf16.gmra.mxu0 %v1500
        %v1606 = vpop.f32.mrf.mxu0
        %v1607 = vadd.f32 %v1522, %v1606
        %v1608 = vpop.f32.mrf.mxu0
        %v1609 = vpop.f32.mrf.mxu0
        %v1610 = vpop.f32.mrf.mxu0
        %1611 = vdwg.mxu0
        %v1612 = vadd.f32 %v1394, %v1607
        %1613 = vst.msk [vmem:[#allocation2] sm:$0xff] %vm705, %v1612
        %p1614 = scmp.eq.s32.totalorder %s34, 1
        // Predicated region
        $region85: #{tpu_custom_call.1} parent=79 // pred_check
          %p1615 = pneg %p1614
        $region86: #{tpu_custom_call.1} parent=79 // pred_check_branch
          %1617 = sbr.rel (%p1615) target = $region88
        $region87: #{tpu_custom_call.1} parent=79 // pred_region
          %v1618 = vld [vmem:[%s13] sm:$0x1]
          %v1619 = vld [vmem:[%s14] sm:$0x1]
          %v1620 = vsel %vm705, %v1612, 0.0
          %1621 = vadd.xlane.f32.xlu0 %v1620
          %v1622 = vpop.xlane.xlu0 %1621
          %v1623 = vmul.f32 %v1622, %v709
          %v1624 = vsub.f32 %v1612, %v1623
          %v1625 = vmul.f32 %v1624, %v1624
          %v1626 = vsel %vm705, %v1625, 0.0
          %1627 = vadd.xlane.f32.xlu0 %v1626
          %v1628 = vpop.xlane.xlu0 %1627
          %v1629 = vmul.f32 %v1628, %v709
          %v1630 = vadd.f32 %v1629, 1e-05
          %v1631 = vrsqrt.pop %v1630
          %v1632 = vmul.f32 %v1624, %v1631
          %v1634 = vlaneseq
          %v1635 = vshrl.u32 %v1634, 7
          %v1636 = vsub.s32 0, %v1635
          %v1637 = vrot.slane %v1618, %v1636
          %v1639 = vmul.f32 %v1632, %v1637
          %v1641 = vlaneseq
          %v1642 = vshrl.u32 %v1641, 7
          %v1643 = vsub.s32 0, %v1642
          %v1644 = vrot.slane %v1619, %v1643
          %v1646 = vadd.f32 %v1639, %v1644
          %1647 = vst.msk [vmem:[%s645] sm:$0xff] %vm705, %v1646
        $region88: #{tpu_custom_call.1} parent=79 // pred_fallthru
          _
        %s1648 = sand.u32 %s429, 1
        %s1649 = scalar_lea.sflag [#allocation4], %s1648
        %s1650 = sand.u32 %s429, 1
        %s1651 = smul.addr %s1650, 8
        %s1652 = scalar_lea.vmem [#allocation3], %s1651
        // Predicated region
        $region89: #{tpu_custom_call.1} parent=79 // pred_check
          %p1653 = pneg %p439
        $region90: #{tpu_custom_call.1} parent=79 // pred_check_branch
          %1655 = sbr.rel (%p1653) target = $region92
        $region91: #{tpu_custom_call.1} parent=79 // pred_region
          %s1657 = ssub.s32 128, 128
          %1658 = vsyncadd %s1649, %s1657
          %s1659 = smul.addr %s33, 128
          %s1660 = scalar_lea.hbm %s15, %s1659
          %s1662 = sshll.u32 %s1652, 4
          %s1663 = int_to_ptr.vmem [resolvable:$true] %s1662
          %1665 = dma.vmem_to_hbm [thread:$0]  %s1663, 128, %s1660, %s1649
        $region92: #{tpu_custom_call.1} parent=79 // pred_fallthru
          _
      $region80: #{tpu_custom_call.1} parent=5 // pred_fallthru
        _
      %p1666 = scmp.le.s32.totalorder 2, %s24
      // Predicated region
      $region93: #{tpu_custom_call.1} parent=5 // pred_check
        %p1667 = pneg %p1666
      $region94: #{tpu_custom_call.1} parent=5 // pred_check_branch
        %1669 = sbr.rel (%p1667) target = $region96
      $region95: #{tpu_custom_call.1} parent=5 // pred_region
        %s1670 = ssub.s32 %s24, 2
        // Predicated region
        $region97: #{tpu_custom_call.1} parent=95 // pred_check
          %p1671 = pneg %p445
        $region98: #{tpu_custom_call.1} parent=95 // pred_check_branch
          %1673 = sbr.rel (%p1671) target = $region100
        $region99: #{tpu_custom_call.1} parent=95 // pred_region
          %s1674 = sand.u32 %s430, 1
          %s1675 = scalar_lea.sflag [#allocation4], %s1674
          %s1676 = sand.u32 %s430, 1
          %s1677 = smul.addr %s1676, 8
          %s1678 = scalar_lea.vmem [#allocation3], %s1677
          %1679 = dma.done %s1675, 128
        $region100: #{tpu_custom_call.1} parent=95 // pred_fallthru
          _
      $region96: #{tpu_custom_call.1} parent=5 // pred_fallthru
        _
    $region6: #{tpu_custom_call.1} parent=1 // loop_footer
      %s28 = sadd.s32 1, %s24
    $region7: #{tpu_custom_call.1} parent=1 // loop_footer_branch
      %23 = sbr.rel target = $region3
    $region8: #{tpu_custom_call.1} parent=1 // loop_exit
      _
    %1680 = vsyncpa [#allocation4], 1
    %s1681 = scalar_lea.sflag [#allocation4], 1
    %1682 = vsyncpa %s1681, 1

</llo_original>
